<compile_context>
chip_gen: v5e
topology: v5e:2x2
jax: 0.10.0
libtpu: 0.0.40
codegen_flags: <defaults>
</compile_context>

<pallas_src>
import jax
import jax.numpy as jnp
from jax import lax
from jax.scipy.linalg import block_diag
from jax.experimental import pallas as pl
from jax.experimental.pallas import tpu as pltpu

# ----- model hyper-parameters (MambaConfig defaults, d_model=16, n_layers=1) -----
D_MODEL = 16
SOC_WINDOW = 1
D_IN = 2 + SOC_WINDOW            # 3
EXPAND = 2
ED = EXPAND * D_MODEL            # 32  (d_inner)
N_STATE = 16                     # d_state
EDN = ED * N_STATE               # 512 (flattened SSM state, lane axis)
D_CONV = 4
DT_RANK = max(1, -(-D_MODEL // 16))   # ceil(d_model/16) == 1 here
LN_EPS = 1e-5                    # nn.LayerNorm default
RMS_EPS = 1e-5                   # MambaConfig.rms_norm_eps default

assert DT_RANK == 1, "kernel below specializes dt_rank == 1 (outer-product dt_proj)"


def _silu(x):
    return x * (1.0 / (1.0 + jnp.exp(-x)))


def _softplus(x):
    # numerically stable softplus: no inf intermediate for large x,
    # matches torch.nn.functional.softplus to fp32 precision.
    return jnp.maximum(x, 0.0) + jnp.log(1.0 + jnp.exp(-jnp.abs(x)))


def _rms_norm(x, w, eps):
    return x * lax.rsqrt(jnp.mean(x * x, axis=-1, keepdims=True) + eps) * w


def _choose_block_b(B, T, max_bt):
    """Largest BB dividing B with BB*T <= max_bt and BB*T % 8 == 0 (or BB == B);
    prefers >= 2 grid steps (v7x dual-TC megacore) when the tile stays big."""
    cands = []
    for d in range(1, B + 1):
        if B % d:
            continue
        bt = d * T
        if bt <= max_bt and (bt % 8 == 0 or d == B):
            cands.append(d)
    if not cands:
        return B
    bb = max(cands)
    if B // bb == 1:
        smaller = [d for d in cands if B // d >= 2 and d * T >= 512]
        if smaller:
            bb = max(smaller)
    return bb


# --------------------------- Pallas forward ---------------------------
def soc_mamba_forward(x, params, *, block_b=None, max_bt=2048, vmem_limit_bytes=None):
    """x: (B, T, 2 + soc_window) float32 -> (y, delta), each (B, T)."""
    B, T, F = x.shape
    assert F == D_IN
    f32 = jnp.float32

    BB = _choose_block_b(B, T, max_bt) if block_b is None else min(block_b, B)
    assert B % BB == 0, "batch must be divisible by the per-step batch block"
    nb = B // BB
    BT = BB * T
    assert nb == 1 or BT % 8 == 0, "per-block token count must be a multiple of 8"

    # ---------------- host-side weight fusion / packing ----------------
    wi_t = params["wi_t"]                                                  # (D_IN, D)
    # five D_MODEL-wide row vectors packed into one (8, D) slab
    rows_d = jnp.concatenate(
        [params["bi"], params["ln_g"], params["ln_b"],
         params["rbnorm_w"], params["fnorm_w"],
         jnp.zeros((3, D_MODEL), f32)], axis=0)                            # (8, D)
    # fused in_proj (x-branch | z-branch)
    wxz_t = jnp.concatenate([params["wx_t"], params["wz_t"]], axis=1)      # (D, 2*ED)
    # ED-wide rows: conv taps (4), conv bias, dt_proj row, dt bias, D
    rows_e = jnp.concatenate(
        [params["conv_w"], params["conv_b"], params["wdt_row"],
         params["bdt"], params["d_row"]], axis=0)                          # (8, ED)
    # fused x_proj: [delta_r | B | C]
    wdbc_t = jnp.concatenate(
        [params["w_delta"].T, params["wB_t"], params["wC_t"]], axis=1)     # (ED, 1+2N)
    a_log_flat = params["a_log"].reshape(1, EDN)                           # (1, ED*N)
    wout_t = params["wout_t"]                                              # (ED, D)
    # output head fused with past-SoC passthrough and bias:
    #   rows = [y ; delta], columns = [wh (D) | past coeff | bias coeff]
    w2 = jnp.concatenate([
        jnp.concatenate([params["wh_row"], jnp.ones((1, 1), f32), params["bh"]], axis=1),
        jnp.concatenate([params["wh_row"], jnp.zeros((1, 1), f32), params["bh"]], axis=1),
    ], axis=0)                                                             # (2, D+2)

    # structural 0/1 matrices: expand (ED->EDN) and tile (N->EDN), fused into one
    # block-diagonal (2*ED+2*N, 4*EDN) operand so a single MXU matmul builds
    # [expand(delta) | expand(delta*x) | tile(B) | tile(C)] at once.
    e_mat = jnp.kron(jnp.eye(ED, dtype=f32), jnp.ones((1, N_STATE), f32))  # (ED, EDN)
    t_mat = jnp.kron(jnp.ones((1, ED), f32), jnp.eye(N_STATE, dtype=f32))  # (N, EDN)
    r_mat = e_mat.T                                                        # (EDN, ED)
    big = block_diag(e_mat, e_mat, t_mat, t_mat)                           # (96, 4*EDN)
    # local time index per row (segment masks for conv shifts + associative scan)
    tvec = jnp.tile(jnp.arange(T, dtype=f32), BB).reshape(BT, 1)           # (BT, 1)

    x2 = x.reshape(B * T, F)
    weights = [wi_t, rows_d, wxz_t, rows_e, wdbc_t, a_log_flat,
               big, r_mat, tvec, wout_t, w2]

    # ---------------- kernel ----------------
    def kernel(x_ref, wi_ref, rd_ref, wxz_ref, re_ref, wdbc_ref, alog_ref,
               big_ref, rm_ref, tvec_ref, wout_ref, w2_ref, out_ref):
        xin = x_ref[...]                                                   # (BT, F)
        rd = rd_ref[...]                                                   # (8, D)
        re = re_ref[...]                                                   # (8, ED)
        tloc = tvec_ref[...]                                               # (BT, 1)

        # ---- input_proj + LayerNorm ----
        h1 = jnp.dot(xin, wi_ref[...], preferred_element_type=jnp.float32) + rd[0:1, :]
        mu = jnp.mean(h1, axis=-1, keepdims=True)
        var = jnp.mean((h1 - mu) ** 2, axis=-1, keepdims=True)
        h1 = (h1 - mu) * lax.rsqrt(var + LN_EPS) * rd[1:2, :] + rd[2:3, :]  # (BT, D)

        # ---- residual block: MambaBlock(RMSNorm(h1)) + h1 ----
        xn = _rms_norm(h1, rd[3:4, :], RMS_EPS)
        xz = jnp.dot(xn, wxz_ref[...], preferred_element_type=jnp.float32)  # (BT, 2*ED)
        xb = xz[:, :ED]
        z = xz[:, ED:]

        # causal depthwise conv1d: 3 masked sublane rolls (XLU) + 4 broadcast FMAs
        conv = re[D_CONV:D_CONV + 1, :] + re[D_CONV - 1:D_CONV, :] * xb
        for s in range(1, D_CONV):
            tap = re[D_CONV - 1 - s:D_CONV - s, :]
            sh = jnp.where(tloc >= float(s), pltpu.roll(xb, s, axis=0), 0.0)
            conv = conv + tap * sh
        xc = _silu(conv)                                                   # (BT, ED)

        # fused x_proj: [delta_r | B | C]
        dbc = jnp.dot(xc, wdbc_ref[...], preferred_element_type=jnp.float32)  # (BT, 1+2N)
        delta_r = dbc[:, 0:1]
        b_mat = dbc[:, 1:1 + N_STATE]
        c_mat = dbc[:, 1 + N_STATE:1 + 2 * N_STATE]

        # dt_proj (dt_rank == 1 -> outer product) + softplus
        delta = _softplus(delta_r * re[D_CONV + 1:D_CONV + 2, :]
                          + re[D_CONV + 2:D_CONV + 3, :])                  # (BT, ED)

        # ---- discretization on flat (BT, ED*N) lane layout: one fused K=96 matmul
        cat = jnp.concatenate([delta, delta * xc, b_mat, c_mat], axis=1)   # (BT, 96)
        ex = jnp.dot(cat, big_ref[...], preferred_element_type=jnp.float32)  # (BT, 4*EDN)
        a_flat = -jnp.exp(alog_ref[...])                                   # (1, EDN)
        a_acc = jnp.exp(ex[:, 0:EDN] * a_flat)                             # dA      (BT, EDN)
        b_acc = ex[:, EDN:2 * EDN] * ex[:, 2 * EDN:3 * EDN]                # dB * x  (BT, EDN)
        c_til = ex[:, 3 * EDN:4 * EDN]                                     # tiled C (BT, EDN)

        # ---- segmented Hillis-Steele associative scan over time ----
        dstep = 1
        while dstep < T:
            pred = tloc >= float(dstep)
            a_sh = jnp.where(pred, pltpu.roll(a_acc, dstep, axis=0), 1.0)
            b_sh = jnp.where(pred, pltpu.roll(b_acc, dstep, axis=0), 0.0)
            b_acc = a_acc * b_sh + b_acc
            a_acc = a_acc * a_sh
            dstep *= 2
        hs = b_acc                                                         # h_t, flattened

        # y_ssm[:, e] = sum_n h[:, e*N+n] * C[:, n]   (one reduction matmul) + D*xc
        y_ssm = (jnp.dot(hs * c_til, rm_ref[...], preferred_element_type=jnp.float32)
                 + re[D_CONV + 3:D_CONV + 4, :] * xc)                      # (BT, ED)

        out = jnp.dot(y_ssm * _silu(z), wout_ref[...],
                      preferred_element_type=jnp.float32)                  # (BT, D)
        h2 = out + h1                                                      # residual

        # ---- final RMSNorm + fused output head (lane-dense rows [y; delta]) ----
        h3 = _rms_norm(h2, rd[4:5, :], RMS_EPS)
        past = xin[:, D_IN - 1:D_IN]                                       # (BT, 1)
        aug = jnp.concatenate([h3, past, jnp.ones((BT, 1), jnp.float32)], axis=1)
        out_ref[0] = lax.dot_general(
            w2_ref[...], aug,
            dimension_numbers=(((1,), (1,)), ((), ())),
            preferred_element_type=jnp.float32)                           # (2, BT)

    def full_spec(a):
        nd = a.ndim
        return pl.BlockSpec(a.shape, lambda i, _nd=nd: (0,) * _nd)

    in_specs = [pl.BlockSpec((BT, F), lambda i: (i, 0))] + [full_spec(w) for w in weights]
    out_spec = pl.BlockSpec((1, 2, BT), lambda i: (i, 0, 0))

    if vmem_limit_bytes is None:
        # rough live working set: (BT, 4*EDN) fused expansion + ~6 (BT, EDN) f32
        # scan buffers + slack; clamp so it is safe on v5e/v6e/v7x alike.
        est = 24 * 1024 * BT + (4 << 20)
        vmem_limit_bytes = int(min(max(est, 16 << 20), 56 << 20))

    out = pl.pallas_call(
        kernel,
        out_shape=jax.ShapeDtypeStruct((nb, 2, BT), jnp.float32),
        grid_spec=pltpu.PrefetchScalarGridSpec(
            num_scalar_prefetch=0,
            grid=(nb,),
            in_specs=in_specs,
            out_specs=out_spec,
        ),
        compiler_params=pltpu.CompilerParams(
            dimension_semantics=("parallel",),
            vmem_limit_bytes=vmem_limit_bytes,
        ),
    )(x2, *weights)

    y = out[:, 0, :].reshape(B, T)
    delta = out[:, 1, :].reshape(B, T)
    return y, delta


# --------------------------- parameter init (deterministic, synthetic) ---------------------------
def make_params(key):
    ks = jax.random.split(key, 12)
    nrm = lambda k, shape, s: (jax.random.normal(k, shape, jnp.float32) * s)
    p = {}
    p["wi_t"] = nrm(ks[0], (D_IN, D_MODEL), 0.3)               # input_proj weight^T
    p["bi"] = jnp.zeros((1, D_MODEL), jnp.float32)
    p["ln_g"] = jnp.ones((1, D_MODEL), jnp.float32)
    p["ln_b"] = jnp.zeros((1, D_MODEL), jnp.float32)
    p["rbnorm_w"] = jnp.ones((1, D_MODEL), jnp.float32)
    p["wx_t"] = nrm(ks[1], (D_MODEL, ED), 0.2)                  # in_proj (x half)^T
    p["wz_t"] = nrm(ks[2], (D_MODEL, ED), 0.2)                  # in_proj (z half)^T
    p["conv_w"] = nrm(ks[3], (D_CONV, ED), 0.2)                 # depthwise conv weight (K, ED)
    p["conv_b"] = jnp.zeros((1, ED), jnp.float32)
    p["w_delta"] = nrm(ks[4], (1, ED), 0.2)                     # x_proj delta row (dt_rank=1)
    p["wB_t"] = nrm(ks[5], (ED, N_STATE), 0.2)
    p["wC_t"] = nrm(ks[6], (ED, N_STATE), 0.2)
    p["wdt_row"] = nrm(ks[7], (1, ED), 0.2)                     # dt_proj weight (dt_rank=1)
    dt = jnp.exp(jax.random.uniform(ks[8], (1, ED), jnp.float32)
                 * (jnp.log(0.1) - jnp.log(0.001)) + jnp.log(0.001))
    p["bdt"] = dt + jnp.log(-jnp.expm1(-dt))                    # inverse softplus of dt
    a_row = jnp.log(jnp.arange(1, N_STATE + 1, dtype=jnp.float32))
    p["a_log"] = jnp.broadcast_to(a_row[None, :], (ED, N_STATE))
    p["d_row"] = jnp.ones((1, ED), jnp.float32)
    p["wout_t"] = nrm(ks[9], (ED, D_MODEL), 0.15)               # out_proj^T
    p["fnorm_w"] = jnp.ones((1, D_MODEL), jnp.float32)
    p["wh_row"] = nrm(ks[10], (1, D_MODEL), 0.2)                # output_head weight row
    p["bh"] = jnp.zeros((1, 1), jnp.float32)
    return p


# --------------------------- pure-JAX reference (same math) ---------------------------
def reference_forward(x, p):
    B, T, F = x.shape
    h1 = x @ p["wi_t"] + p["bi"]
    mu = h1.mean(-1, keepdims=True)
    var = ((h1 - mu) ** 2).mean(-1, keepdims=True)
    h1 = (h1 - mu) * lax.rsqrt(var + LN_EPS) * p["ln_g"] + p["ln_b"]
    xn = _rms_norm(h1, p["rbnorm_w"], RMS_EPS)
    xb = xn @ p["wx_t"]
    z = xn @ p["wz_t"]
    xpad = jnp.concatenate([jnp.zeros((B, D_CONV - 1, ED), jnp.float32), xb], axis=1)
    conv = jnp.broadcast_to(p["conv_b"], (B, T, ED))
    for k in range(D_CONV):
        conv = conv + p["conv_w"][k] * xpad[:, k:k + T, :]
    xc = _silu(conv)
    delta_r = jnp.sum(xc * p["w_delta"], -1, keepdims=True)
    Bm = xc @ p["wB_t"]
    Cm = xc @ p["wC_t"]
    delta = _softplus(delta_r * p["wdt_row"] + p["bdt"])
    A = -jnp.exp(p["a_log"])                                   # (ED, N)
    dA = jnp.exp(delta[..., None] * A[None, None])             # (B, T, ED, N)
    dBx = (delta * xc)[..., None] * Bm[:, :, None, :]

    def step(h, inp):
        da, dbx = inp
        h = da * h + dbx
        return h, h

    def scan_b(da_b, dbx_b):
        _, hs = lax.scan(step, jnp.zeros((ED, N_STATE), jnp.float32), (da_b, dbx_b))
        return hs

    hs = jax.vmap(scan_b)(dA, dBx)                             # (B, T, ED, N)
    y_ssm = jnp.sum(hs * Cm[:, :, None, :], axis=-1) + p["d_row"] * xc
    out = (y_ssm * _silu(z)) @ p["wout_t"]
    h2 = out + h1
    h3 = _rms_norm(h2, p["fnorm_w"], RMS_EPS)
    dlt = jnp.sum(h3 * p["wh_row"], -1, keepdims=True) + p["bh"][0, 0]
    y = x[:, :, -1:] + dlt
    return y[..., 0], dlt[..., 0]


if __name__ == "__main__":
    B, T = 2, 8
    key = jax.random.PRNGKey(0)
    kx, kp = jax.random.split(key)
    x = jax.random.normal(kx, (B, T, D_IN), jnp.float32)
    params = make_params(kp)

    y, delta = soc_mamba_forward(x, params)
    jax.block_until_ready((y, delta))
    assert y.shape == (B, T) and delta.shape == (B, T)

    y_ref, d_ref = reference_forward(x, params)
    err = max(float(jnp.max(jnp.abs(y - y_ref))), float(jnp.max(jnp.abs(delta - d_ref))))
    assert jnp.isfinite(y).all() and jnp.isfinite(delta).all()
    assert err < 1e-3, f"mismatch vs reference: {err}"
    print("KERNEL_OK")
</pallas_src>

<mosaic_0001>
module attributes {stable_mosaic.version = 11 : i64} {
  func.func @kernel(%arg0: i32, %arg1: memref<16x3xf32, #tpu.memory_space<vmem>>, %arg2: memref<3x16xf32, #tpu.memory_space<vmem>>, %arg3: memref<8x16xf32, #tpu.memory_space<vmem>>, %arg4: memref<16x64xf32, #tpu.memory_space<vmem>>, %arg5: memref<8x32xf32, #tpu.memory_space<vmem>>, %arg6: memref<32x33xf32, #tpu.memory_space<vmem>>, %arg7: memref<1x512xf32, #tpu.memory_space<vmem>>, %arg8: memref<96x2048xf32, #tpu.memory_space<vmem>>, %arg9: memref<512x32xf32, #tpu.memory_space<vmem>>, %arg10: memref<16x1xf32, #tpu.memory_space<vmem>>, %arg11: memref<32x16xf32, #tpu.memory_space<vmem>>, %arg12: memref<2x18xf32, #tpu.memory_space<vmem>>, %arg13: memref<1x2x16xf32, #tpu.memory_space<vmem>>) attributes {dimension_semantics = [#tpu.dimension_semantics<parallel>], iteration_bounds = array<i64: 1>, scalar_prefetch = 0 : i64, scratch_operands = 0 : i64, tpu.core_type = #tpu.core_type<tc>, window_params = [{transform_indices = @transform_0, window_bounds = array<i64: 16, 3>}, {pipeline_mode = #tpu.pipeline_mode<synchronous>, transform_indices = @transform_1, window_bounds = array<i64: 3, 16>}, {pipeline_mode = #tpu.pipeline_mode<synchronous>, transform_indices = @transform_2, window_bounds = array<i64: 8, 16>}, {pipeline_mode = #tpu.pipeline_mode<synchronous>, transform_indices = @transform_3, window_bounds = array<i64: 16, 64>}, {pipeline_mode = #tpu.pipeline_mode<synchronous>, transform_indices = @transform_4, window_bounds = array<i64: 8, 32>}, {pipeline_mode = #tpu.pipeline_mode<synchronous>, transform_indices = @transform_5, window_bounds = array<i64: 32, 33>}, {pipeline_mode = #tpu.pipeline_mode<synchronous>, transform_indices = @transform_6, window_bounds = array<i64: 1, 512>}, {pipeline_mode = #tpu.pipeline_mode<synchronous>, transform_indices = @transform_7, window_bounds = array<i64: 96, 2048>}, {pipeline_mode = #tpu.pipeline_mode<synchronous>, transform_indices = @transform_8, window_bounds = array<i64: 512, 32>}, {pipeline_mode = #tpu.pipeline_mode<synchronous>, transform_indices = @transform_9, window_bounds = array<i64: 16, 1>}, {pipeline_mode = #tpu.pipeline_mode<synchronous>, transform_indices = @transform_10, window_bounds = array<i64: 32, 16>}, {pipeline_mode = #tpu.pipeline_mode<synchronous>, transform_indices = @transform_11, window_bounds = array<i64: 2, 18>}, {transform_indices = @transform_12, window_bounds = array<i64: 1, 2, 16>}]} {
    %c0 = arith.constant 0 : index
    %c0_0 = arith.constant 0 : index
    %0 = vector.load %arg1[%c0, %c0_0] : memref<16x3xf32, #tpu.memory_space<vmem>>, vector<16x3xf32>
    %c0_1 = arith.constant 0 : index
    %c0_2 = arith.constant 0 : index
    %1 = vector.load %arg3[%c0_1, %c0_2] : memref<8x16xf32, #tpu.memory_space<vmem>>, vector<8x16xf32>
    %c0_3 = arith.constant 0 : index
    %c0_4 = arith.constant 0 : index
    %2 = vector.load %arg5[%c0_3, %c0_4] : memref<8x32xf32, #tpu.memory_space<vmem>>, vector<8x32xf32>
    %c0_5 = arith.constant 0 : index
    %c0_6 = arith.constant 0 : index
    %3 = vector.load %arg10[%c0_5, %c0_6] : memref<16x1xf32, #tpu.memory_space<vmem>>, vector<16x1xf32>
    %c0_7 = arith.constant 0 : index
    %c0_8 = arith.constant 0 : index
    %4 = vector.load %arg2[%c0_7, %c0_8] : memref<3x16xf32, #tpu.memory_space<vmem>>, vector<3x16xf32>
    %cst = arith.constant dense<0.000000e+00> : vector<16x16xf32>
    %5 = tpu.matmul %0, %4, %cst {dimension_numbers = #tpu.dot_dimension_numbers<[1], [0], [0], [1], [0, 0, 1, 1], [], []>} : vector<16x3xf32>, vector<3x16xf32>, vector<16x16xf32> -> vector<16x16xf32>
    %6 = vector.extract_strided_slice %1 {offsets = [0, 0], sizes = [1, 16], strides = [1, 1]} : vector<8x16xf32> to vector<1x16xf32>
    %7 = vector.broadcast %6 : vector<1x16xf32> to vector<16x16xf32>
    %8 = arith.addf %5, %7 : vector<16x16xf32>
    %cst_9 = arith.constant dense<0.000000e+00> : vector<16xf32>
    %9 = vector.multi_reduction <add>, %8, %cst_9 [1] : vector<16x16xf32> to vector<16xf32>
    %10 = vector.shape_cast %9 : vector<16xf32> to vector<16x1xf32>
    %cst_10 = arith.constant 1.600000e+01 : f32
    %11 = vector.broadcast %cst_10 : f32 to vector<16x1xf32>
    %12 = arith.divf %10, %11 : vector<16x1xf32>
    %13 = vector.broadcast %12 : vector<16x1xf32> to vector<16x16xf32>
    %14 = arith.subf %8, %13 : vector<16x16xf32>
    %15 = arith.mulf %14, %14 : vector<16x16xf32>
    %cst_11 = arith.constant dense<0.000000e+00> : vector<16xf32>
    %16 = vector.multi_reduction <add>, %15, %cst_11 [1] : vector<16x16xf32> to vector<16xf32>
    %17 = vector.shape_cast %16 : vector<16xf32> to vector<16x1xf32>
    %cst_12 = arith.constant 1.600000e+01 : f32
    %18 = vector.broadcast %cst_12 : f32 to vector<16x1xf32>
    %19 = arith.divf %17, %18 : vector<16x1xf32>
    %20 = vector.broadcast %12 : vector<16x1xf32> to vector<16x16xf32>
    %21 = arith.subf %8, %20 : vector<16x16xf32>
    %cst_13 = arith.constant 9.99999974E-6 : f32
    %22 = vector.broadcast %cst_13 : f32 to vector<16x1xf32>
    %23 = arith.addf %19, %22 : vector<16x1xf32>
    %24 = math.rsqrt %23 : vector<16x1xf32>
    %25 = vector.broadcast %24 : vector<16x1xf32> to vector<16x16xf32>
    %26 = arith.mulf %21, %25 : vector<16x16xf32>
    %27 = vector.extract_strided_slice %1 {offsets = [1, 0], sizes = [1, 16], strides = [1, 1]} : vector<8x16xf32> to vector<1x16xf32>
    %28 = vector.broadcast %27 : vector<1x16xf32> to vector<16x16xf32>
    %29 = arith.mulf %26, %28 : vector<16x16xf32>
    %30 = vector.extract_strided_slice %1 {offsets = [2, 0], sizes = [1, 16], strides = [1, 1]} : vector<8x16xf32> to vector<1x16xf32>
    %31 = vector.broadcast %30 : vector<1x16xf32> to vector<16x16xf32>
    %32 = arith.addf %29, %31 : vector<16x16xf32>
    %33 = vector.extract_strided_slice %1 {offsets = [3, 0], sizes = [1, 16], strides = [1, 1]} : vector<8x16xf32> to vector<1x16xf32>
    %34 = arith.mulf %32, %32 : vector<16x16xf32>
    %cst_14 = arith.constant dense<0.000000e+00> : vector<16xf32>
    %35 = vector.multi_reduction <add>, %34, %cst_14 [1] : vector<16x16xf32> to vector<16xf32>
    %36 = vector.shape_cast %35 : vector<16xf32> to vector<16x1xf32>
    %cst_15 = arith.constant 1.600000e+01 : f32
    %37 = vector.broadcast %cst_15 : f32 to vector<16x1xf32>
    %38 = arith.divf %36, %37 : vector<16x1xf32>
    %cst_16 = arith.constant 9.99999974E-6 : f32
    %39 = vector.broadcast %cst_16 : f32 to vector<16x1xf32>
    %40 = arith.addf %38, %39 : vector<16x1xf32>
    %41 = math.rsqrt %40 : vector<16x1xf32>
    %42 = vector.broadcast %41 : vector<16x1xf32> to vector<16x16xf32>
    %43 = arith.mulf %32, %42 : vector<16x16xf32>
    %44 = vector.broadcast %33 : vector<1x16xf32> to vector<16x16xf32>
    %45 = arith.mulf %43, %44 : vector<16x16xf32>
    %c0_17 = arith.constant 0 : index
    %c0_18 = arith.constant 0 : index
    %46 = vector.load %arg4[%c0_17, %c0_18] : memref<16x64xf32, #tpu.memory_space<vmem>>, vector<16x64xf32>
    %cst_19 = arith.constant dense<0.000000e+00> : vector<16x64xf32>
    %47 = tpu.matmul %45, %46, %cst_19 {dimension_numbers = #tpu.dot_dimension_numbers<[1], [0], [0], [1], [0, 0, 1, 1], [], []>} : vector<16x16xf32>, vector<16x64xf32>, vector<16x64xf32> -> vector<16x64xf32>
    %48 = vector.extract_strided_slice %47 {offsets = [0, 0], sizes = [16, 32], strides = [1, 1]} : vector<16x64xf32> to vector<16x32xf32>
    %49 = vector.extract_strided_slice %47 {offsets = [0, 32], sizes = [16, 32], strides = [1, 1]} : vector<16x64xf32> to vector<16x32xf32>
    %50 = vector.extract_strided_slice %2 {offsets = [4, 0], sizes = [1, 32], strides = [1, 1]} : vector<8x32xf32> to vector<1x32xf32>
    %51 = vector.extract_strided_slice %2 {offsets = [3, 0], sizes = [1, 32], strides = [1, 1]} : vector<8x32xf32> to vector<1x32xf32>
    %52 = vector.broadcast %51 : vector<1x32xf32> to vector<16x32xf32>
    %53 = arith.mulf %52, %48 : vector<16x32xf32>
    %54 = vector.broadcast %50 : vector<1x32xf32> to vector<16x32xf32>
    %55 = arith.addf %54, %53 : vector<16x32xf32>
    %56 = vector.extract_strided_slice %2 {offsets = [2, 0], sizes = [1, 32], strides = [1, 1]} : vector<8x32xf32> to vector<1x32xf32>
    %cst_20 = arith.constant 1.000000e+00 : f32
    %57 = vector.broadcast %cst_20 : f32 to vector<16x1xf32>
    %58 = arith.cmpf oge, %3, %57 : vector<16x1xf32>
    %c1_i32 = arith.constant 1 : i32
    %59 = tpu.dynamic_rotate %48 by %c1_i32 dim 0 : vector<16x32xf32>, i32 -> vector<16x32xf32>
    %cst_21 = arith.constant 0.000000e+00 : f32
    %60 = vector.shape_cast %58 : vector<16x1xi1> to vector<16x1xi1>
    %61 = vector.broadcast %60 : vector<16x1xi1> to vector<16x32xi1>
    %62 = vector.broadcast %cst_21 : f32 to vector<16x32xf32>
    %63 = arith.select %61, %59, %62 : vector<16x32xi1>, vector<16x32xf32>
    %64 = vector.broadcast %56 : vector<1x32xf32> to vector<16x32xf32>
    %65 = arith.mulf %64, %63 : vector<16x32xf32>
    %66 = arith.addf %55, %65 : vector<16x32xf32>
    %67 = vector.extract_strided_slice %2 {offsets = [1, 0], sizes = [1, 32], strides = [1, 1]} : vector<8x32xf32> to vector<1x32xf32>
    %cst_22 = arith.constant 2.000000e+00 : f32
    %68 = vector.broadcast %cst_22 : f32 to vector<16x1xf32>
    %69 = arith.cmpf oge, %3, %68 : vector<16x1xf32>
    %c2_i32 = arith.constant 2 : i32
    %70 = tpu.dynamic_rotate %48 by %c2_i32 dim 0 : vector<16x32xf32>, i32 -> vector<16x32xf32>
    %cst_23 = arith.constant 0.000000e+00 : f32
    %71 = vector.shape_cast %69 : vector<16x1xi1> to vector<16x1xi1>
    %72 = vector.broadcast %71 : vector<16x1xi1> to vector<16x32xi1>
    %73 = vector.broadcast %cst_23 : f32 to vector<16x32xf32>
    %74 = arith.select %72, %70, %73 : vector<16x32xi1>, vector<16x32xf32>
    %75 = vector.broadcast %67 : vector<1x32xf32> to vector<16x32xf32>
    %76 = arith.mulf %75, %74 : vector<16x32xf32>
    %77 = arith.addf %66, %76 : vector<16x32xf32>
    %78 = vector.extract_strided_slice %2 {offsets = [0, 0], sizes = [1, 32], strides = [1, 1]} : vector<8x32xf32> to vector<1x32xf32>
    %cst_24 = arith.constant 3.000000e+00 : f32
    %79 = vector.broadcast %cst_24 : f32 to vector<16x1xf32>
    %80 = arith.cmpf oge, %3, %79 : vector<16x1xf32>
    %c3_i32 = arith.constant 3 : i32
    %81 = tpu.dynamic_rotate %48 by %c3_i32 dim 0 : vector<16x32xf32>, i32 -> vector<16x32xf32>
    %cst_25 = arith.constant 0.000000e+00 : f32
    %82 = vector.shape_cast %80 : vector<16x1xi1> to vector<16x1xi1>
    %83 = vector.broadcast %82 : vector<16x1xi1> to vector<16x32xi1>
    %84 = vector.broadcast %cst_25 : f32 to vector<16x32xf32>
    %85 = arith.select %83, %81, %84 : vector<16x32xi1>, vector<16x32xf32>
    %86 = vector.broadcast %78 : vector<1x32xf32> to vector<16x32xf32>
    %87 = arith.mulf %86, %85 : vector<16x32xf32>
    %88 = arith.addf %77, %87 : vector<16x32xf32>
    %cst_26 = arith.constant 0.000000e+00 : f32
    %89 = vector.broadcast %cst_26 : f32 to vector<16x32xf32>
    %90 = arith.subf %89, %88 : vector<16x32xf32>
    %91 = math.exp %90 : vector<16x32xf32>
    %cst_27 = arith.constant 1.000000e+00 : f32
    %92 = vector.broadcast %cst_27 : f32 to vector<16x32xf32>
    %93 = arith.addf %92, %91 : vector<16x32xf32>
    %cst_28 = arith.constant 1.000000e+00 : f32
    %94 = vector.broadcast %cst_28 : f32 to vector<16x32xf32>
    %95 = arith.divf %94, %93 : vector<16x32xf32>
    %96 = arith.mulf %88, %95 : vector<16x32xf32>
    %c0_29 = arith.constant 0 : index
    %c0_30 = arith.constant 0 : index
    %97 = vector.load %arg6[%c0_29, %c0_30] : memref<32x33xf32, #tpu.memory_space<vmem>>, vector<32x33xf32>
    %cst_31 = arith.constant dense<0.000000e+00> : vector<16x33xf32>
    %98 = tpu.matmul %96, %97, %cst_31 {dimension_numbers = #tpu.dot_dimension_numbers<[1], [0], [0], [1], [0, 0, 1, 1], [], []>} : vector<16x32xf32>, vector<32x33xf32>, vector<16x33xf32> -> vector<16x33xf32>
    %99 = vector.extract_strided_slice %98 {offsets = [0, 0], sizes = [16, 1], strides = [1, 1]} : vector<16x33xf32> to vector<16x1xf32>
    %100 = vector.extract_strided_slice %98 {offsets = [0, 1], sizes = [16, 16], strides = [1, 1]} : vector<16x33xf32> to vector<16x16xf32>
    %101 = vector.extract_strided_slice %98 {offsets = [0, 17], sizes = [16, 16], strides = [1, 1]} : vector<16x33xf32> to vector<16x16xf32>
    %102 = vector.extract_strided_slice %2 {offsets = [5, 0], sizes = [1, 32], strides = [1, 1]} : vector<8x32xf32> to vector<1x32xf32>
    %103 = vector.broadcast %99 : vector<16x1xf32> to vector<16x32xf32>
    %104 = vector.broadcast %102 : vector<1x32xf32> to vector<16x32xf32>
    %105 = arith.mulf %103, %104 : vector<16x32xf32>
    %106 = vector.extract_strided_slice %2 {offsets = [6, 0], sizes = [1, 32], strides = [1, 1]} : vector<8x32xf32> to vector<1x32xf32>
    %107 = vector.broadcast %106 : vector<1x32xf32> to vector<16x32xf32>
    %108 = arith.addf %105, %107 : vector<16x32xf32>
    %cst_32 = arith.constant 0.000000e+00 : f32
    %109 = vector.broadcast %cst_32 : f32 to vector<16x32xf32>
    %110 = arith.maximumf %108, %109 : vector<16x32xf32>
    %111 = math.absf %108 : vector<16x32xf32>
    %cst_33 = arith.constant 0.000000e+00 : f32
    %112 = vector.broadcast %cst_33 : f32 to vector<16x32xf32>
    %113 = arith.subf %112, %111 : vector<16x32xf32>
    %114 = math.exp %113 : vector<16x32xf32>
    %cst_34 = arith.constant 1.000000e+00 : f32
    %115 = vector.broadcast %cst_34 : f32 to vector<16x32xf32>
    %116 = arith.addf %115, %114 : vector<16x32xf32>
    %117 = math.log %116 : vector<16x32xf32>
    %118 = arith.addf %110, %117 : vector<16x32xf32>
    %119 = arith.mulf %118, %96 : vector<16x32xf32>
    %120 = tpu.concatenate %118, %119, %100, %101 in 1 : vector<16x32xf32>, vector<16x32xf32>, vector<16x16xf32>, vector<16x16xf32> -> vector<16x96xf32>
    %c0_35 = arith.constant 0 : index
    %c0_36 = arith.constant 0 : index
    %121 = vector.load %arg8[%c0_35, %c0_36] : memref<96x2048xf32, #tpu.memory_space<vmem>>, vector<96x2048xf32>
    %cst_37 = arith.constant dense<0.000000e+00> : vector<16x2048xf32>
    %122 = tpu.matmul %120, %121, %cst_37 {dimension_numbers = #tpu.dot_dimension_numbers<[1], [0], [0], [1], [0, 0, 1, 1], [], []>} : vector<16x96xf32>, vector<96x2048xf32>, vector<16x2048xf32> -> vector<16x2048xf32>
    %c0_38 = arith.constant 0 : index
    %c0_39 = arith.constant 0 : index
    %123 = vector.load %arg7[%c0_38, %c0_39] : memref<1x512xf32, #tpu.memory_space<vmem>>, vector<1x512xf32>
    %124 = math.exp %123 : vector<1x512xf32>
    %cst_40 = arith.constant 0.000000e+00 : f32
    %125 = vector.broadcast %cst_40 : f32 to vector<1x512xf32>
    %126 = arith.subf %125, %124 : vector<1x512xf32>
    %127 = vector.extract_strided_slice %122 {offsets = [0, 0], sizes = [16, 512], strides = [1, 1]} : vector<16x2048xf32> to vector<16x512xf32>
    %128 = vector.broadcast %126 : vector<1x512xf32> to vector<16x512xf32>
    %129 = arith.mulf %127, %128 : vector<16x512xf32>
    %130 = math.exp %129 : vector<16x512xf32>
    %131 = vector.extract_strided_slice %122 {offsets = [0, 512], sizes = [16, 512], strides = [1, 1]} : vector<16x2048xf32> to vector<16x512xf32>
    %132 = vector.extract_strided_slice %122 {offsets = [0, 1024], sizes = [16, 512], strides = [1, 1]} : vector<16x2048xf32> to vector<16x512xf32>
    %133 = arith.mulf %131, %132 : vector<16x512xf32>
    %134 = vector.extract_strided_slice %122 {offsets = [0, 1536], sizes = [16, 512], strides = [1, 1]} : vector<16x2048xf32> to vector<16x512xf32>
    %cst_41 = arith.constant 1.000000e+00 : f32
    %135 = vector.broadcast %cst_41 : f32 to vector<16x1xf32>
    %136 = arith.cmpf oge, %3, %135 : vector<16x1xf32>
    %c1_i32_42 = arith.constant 1 : i32
    %137 = tpu.dynamic_rotate %130 by %c1_i32_42 dim 0 : vector<16x512xf32>, i32 -> vector<16x512xf32>
    %cst_43 = arith.constant 1.000000e+00 : f32
    %138 = vector.shape_cast %136 : vector<16x1xi1> to vector<16x1xi1>
    %139 = vector.broadcast %138 : vector<16x1xi1> to vector<16x512xi1>
    %140 = vector.broadcast %cst_43 : f32 to vector<16x512xf32>
    %141 = arith.select %139, %137, %140 : vector<16x512xi1>, vector<16x512xf32>
    %c1_i32_44 = arith.constant 1 : i32
    %142 = tpu.dynamic_rotate %133 by %c1_i32_44 dim 0 : vector<16x512xf32>, i32 -> vector<16x512xf32>
    %cst_45 = arith.constant 0.000000e+00 : f32
    %143 = vector.shape_cast %136 : vector<16x1xi1> to vector<16x1xi1>
    %144 = vector.broadcast %143 : vector<16x1xi1> to vector<16x512xi1>
    %145 = vector.broadcast %cst_45 : f32 to vector<16x512xf32>
    %146 = arith.select %144, %142, %145 : vector<16x512xi1>, vector<16x512xf32>
    %147 = arith.mulf %130, %146 : vector<16x512xf32>
    %148 = arith.addf %147, %133 : vector<16x512xf32>
    %149 = arith.mulf %130, %141 : vector<16x512xf32>
    %cst_46 = arith.constant 2.000000e+00 : f32
    %150 = vector.broadcast %cst_46 : f32 to vector<16x1xf32>
    %151 = arith.cmpf oge, %3, %150 : vector<16x1xf32>
    %c2_i32_47 = arith.constant 2 : i32
    %152 = tpu.dynamic_rotate %149 by %c2_i32_47 dim 0 : vector<16x512xf32>, i32 -> vector<16x512xf32>
    %cst_48 = arith.constant 1.000000e+00 : f32
    %153 = vector.shape_cast %151 : vector<16x1xi1> to vector<16x1xi1>
    %154 = vector.broadcast %153 : vector<16x1xi1> to vector<16x512xi1>
    %155 = vector.broadcast %cst_48 : f32 to vector<16x512xf32>
    %156 = arith.select %154, %152, %155 : vector<16x512xi1>, vector<16x512xf32>
    %c2_i32_49 = arith.constant 2 : i32
    %157 = tpu.dynamic_rotate %148 by %c2_i32_49 dim 0 : vector<16x512xf32>, i32 -> vector<16x512xf32>
    %cst_50 = arith.constant 0.000000e+00 : f32
    %158 = vector.shape_cast %151 : vector<16x1xi1> to vector<16x1xi1>
    %159 = vector.broadcast %158 : vector<16x1xi1> to vector<16x512xi1>
    %160 = vector.broadcast %cst_50 : f32 to vector<16x512xf32>
    %161 = arith.select %159, %157, %160 : vector<16x512xi1>, vector<16x512xf32>
    %162 = arith.mulf %149, %161 : vector<16x512xf32>
    %163 = arith.addf %162, %148 : vector<16x512xf32>
    %164 = arith.mulf %149, %156 : vector<16x512xf32>
    %cst_51 = arith.constant 4.000000e+00 : f32
    %165 = vector.broadcast %cst_51 : f32 to vector<16x1xf32>
    %166 = arith.cmpf oge, %3, %165 : vector<16x1xf32>
    %c4_i32 = arith.constant 4 : i32
    %167 = tpu.dynamic_rotate %163 by %c4_i32 dim 0 : vector<16x512xf32>, i32 -> vector<16x512xf32>
    %cst_52 = arith.constant 0.000000e+00 : f32
    %168 = vector.shape_cast %166 : vector<16x1xi1> to vector<16x1xi1>
    %169 = vector.broadcast %168 : vector<16x1xi1> to vector<16x512xi1>
    %170 = vector.broadcast %cst_52 : f32 to vector<16x512xf32>
    %171 = arith.select %169, %167, %170 : vector<16x512xi1>, vector<16x512xf32>
    %172 = arith.mulf %164, %171 : vector<16x512xf32>
    %173 = arith.addf %172, %163 : vector<16x512xf32>
    %174 = arith.mulf %173, %134 : vector<16x512xf32>
    %c0_53 = arith.constant 0 : index
    %c0_54 = arith.constant 0 : index
    %175 = vector.load %arg9[%c0_53, %c0_54] : memref<512x32xf32, #tpu.memory_space<vmem>>, vector<512x32xf32>
    %cst_55 = arith.constant dense<0.000000e+00> : vector<16x32xf32>
    %176 = tpu.matmul %174, %175, %cst_55 {dimension_numbers = #tpu.dot_dimension_numbers<[1], [0], [0], [1], [0, 0, 1, 1], [], []>} : vector<16x512xf32>, vector<512x32xf32>, vector<16x32xf32> -> vector<16x32xf32>
    %177 = vector.extract_strided_slice %2 {offsets = [7, 0], sizes = [1, 32], strides = [1, 1]} : vector<8x32xf32> to vector<1x32xf32>
    %178 = vector.broadcast %177 : vector<1x32xf32> to vector<16x32xf32>
    %179 = arith.mulf %178, %96 : vector<16x32xf32>
    %180 = arith.addf %176, %179 : vector<16x32xf32>
    %cst_56 = arith.constant 0.000000e+00 : f32
    %181 = vector.broadcast %cst_56 : f32 to vector<16x32xf32>
    %182 = arith.subf %181, %49 : vector<16x32xf32>
    %183 = math.exp %182 : vector<16x32xf32>
    %cst_57 = arith.constant 1.000000e+00 : f32
    %184 = vector.broadcast %cst_57 : f32 to vector<16x32xf32>
    %185 = arith.addf %184, %183 : vector<16x32xf32>
    %cst_58 = arith.constant 1.000000e+00 : f32
    %186 = vector.broadcast %cst_58 : f32 to vector<16x32xf32>
    %187 = arith.divf %186, %185 : vector<16x32xf32>
    %188 = arith.mulf %49, %187 : vector<16x32xf32>
    %189 = arith.mulf %180, %188 : vector<16x32xf32>
    %c0_59 = arith.constant 0 : index
    %c0_60 = arith.constant 0 : index
    %190 = vector.load %arg11[%c0_59, %c0_60] : memref<32x16xf32, #tpu.memory_space<vmem>>, vector<32x16xf32>
    %cst_61 = arith.constant dense<0.000000e+00> : vector<16x16xf32>
    %191 = tpu.matmul %189, %190, %cst_61 {dimension_numbers = #tpu.dot_dimension_numbers<[1], [0], [0], [1], [0, 0, 1, 1], [], []>} : vector<16x32xf32>, vector<32x16xf32>, vector<16x16xf32> -> vector<16x16xf32>
    %192 = arith.addf %191, %32 : vector<16x16xf32>
    %193 = vector.extract_strided_slice %1 {offsets = [4, 0], sizes = [1, 16], strides = [1, 1]} : vector<8x16xf32> to vector<1x16xf32>
    %194 = arith.mulf %192, %192 : vector<16x16xf32>
    %cst_62 = arith.constant dense<0.000000e+00> : vector<16xf32>
    %195 = vector.multi_reduction <add>, %194, %cst_62 [1] : vector<16x16xf32> to vector<16xf32>
    %196 = vector.shape_cast %195 : vector<16xf32> to vector<16x1xf32>
    %cst_63 = arith.constant 1.600000e+01 : f32
    %197 = vector.broadcast %cst_63 : f32 to vector<16x1xf32>
    %198 = arith.divf %196, %197 : vector<16x1xf32>
    %cst_64 = arith.constant 9.99999974E-6 : f32
    %199 = vector.broadcast %cst_64 : f32 to vector<16x1xf32>
    %200 = arith.addf %198, %199 : vector<16x1xf32>
    %201 = math.rsqrt %200 : vector<16x1xf32>
    %202 = vector.broadcast %201 : vector<16x1xf32> to vector<16x16xf32>
    %203 = arith.mulf %192, %202 : vector<16x16xf32>
    %204 = vector.broadcast %193 : vector<1x16xf32> to vector<16x16xf32>
    %205 = arith.mulf %203, %204 : vector<16x16xf32>
    %206 = vector.extract_strided_slice %0 {offsets = [0, 2], sizes = [16, 1], strides = [1, 1]} : vector<16x3xf32> to vector<16x1xf32>
    %cst_65 = arith.constant 1.000000e+00 : f32
    %207 = vector.broadcast %cst_65 : f32 to vector<16x1xf32>
    %208 = tpu.concatenate %205, %206, %207 in 1 : vector<16x16xf32>, vector<16x1xf32>, vector<16x1xf32> -> vector<16x18xf32>
    %c0_66 = arith.constant 0 : index
    %c0_67 = arith.constant 0 : index
    %209 = vector.load %arg12[%c0_66, %c0_67] : memref<2x18xf32, #tpu.memory_space<vmem>>, vector<2x18xf32>
    %cst_68 = arith.constant dense<0.000000e+00> : vector<2x16xf32>
    %210 = tpu.matmul %209, %208, %cst_68 {dimension_numbers = #tpu.dot_dimension_numbers<[1], [1], [0], [0], [0, 0, 1, 0], [], []>} : vector<2x18xf32>, vector<16x18xf32>, vector<2x16xf32> -> vector<2x16xf32>
    %c0_69 = arith.constant 0 : index
    %c0_70 = arith.constant 0 : index
    %c0_71 = arith.constant 0 : index
    %211 = vector.load %arg13[%c0_69, %c0_70, %c0_71] : memref<1x2x16xf32, #tpu.memory_space<vmem>>, vector<1x2x16xf32>
    %212 = vector.shape_cast %211 : vector<1x2x16xf32> to vector<2x16xf32>
    %213 = vector.shape_cast %210 : vector<2x16xf32> to vector<1x2x16xf32>
    tpu.vector_store %arg13[%c0_69, %c0_70, %c0_71], %213 {strides = array<i32>} : memref<1x2x16xf32, #tpu.memory_space<vmem>>, vector<1x2x16xf32>,
    return
  }
  func.func @transform_0(%arg0: i32) -> (i32, i32) {
    %c0_i32 = arith.constant 0 : i32
    %c0_i32_0 = arith.constant 0 : i32
    return %arg0, %c0_i32 : i32, i32
  }
  func.func @transform_1(%arg0: i32) -> (i32, i32) {
    %c0_i32 = arith.constant 0 : i32
    %c0_i32_0 = arith.constant 0 : i32
    %c0_i32_1 = arith.constant 0 : i32
    return %c0_i32, %c0_i32_0 : i32, i32
  }
  func.func @transform_2(%arg0: i32) -> (i32, i32) {
    %c0_i32 = arith.constant 0 : i32
    %c0_i32_0 = arith.constant 0 : i32
    %c0_i32_1 = arith.constant 0 : i32
    return %c0_i32, %c0_i32_0 : i32, i32
  }
  func.func @transform_3(%arg0: i32) -> (i32, i32) {
    %c0_i32 = arith.constant 0 : i32
    %c0_i32_0 = arith.constant 0 : i32
    %c0_i32_1 = arith.constant 0 : i32
    return %c0_i32, %c0_i32_0 : i32, i32
  }
  func.func @transform_4(%arg0: i32) -> (i32, i32) {
    %c0_i32 = arith.constant 0 : i32
    %c0_i32_0 = arith.constant 0 : i32
    %c0_i32_1 = arith.constant 0 : i32
    return %c0_i32, %c0_i32_0 : i32, i32
  }
  func.func @transform_5(%arg0: i32) -> (i32, i32) {
    %c0_i32 = arith.constant 0 : i32
    %c0_i32_0 = arith.constant 0 : i32
    %c0_i32_1 = arith.constant 0 : i32
    return %c0_i32, %c0_i32_0 : i32, i32
  }
  func.func @transform_6(%arg0: i32) -> (i32, i32) {
    %c0_i32 = arith.constant 0 : i32
    %c0_i32_0 = arith.constant 0 : i32
    %c0_i32_1 = arith.constant 0 : i32
    return %c0_i32, %c0_i32_0 : i32, i32
  }
  func.func @transform_7(%arg0: i32) -> (i32, i32) {
    %c0_i32 = arith.constant 0 : i32
    %c0_i32_0 = arith.constant 0 : i32
    %c0_i32_1 = arith.constant 0 : i32
    return %c0_i32, %c0_i32_0 : i32, i32
  }
  func.func @transform_8(%arg0: i32) -> (i32, i32) {
    %c0_i32 = arith.constant 0 : i32
    %c0_i32_0 = arith.constant 0 : i32
    %c0_i32_1 = arith.constant 0 : i32
    return %c0_i32, %c0_i32_0 : i32, i32
  }
  func.func @transform_9(%arg0: i32) -> (i32, i32) {
    %c0_i32 = arith.constant 0 : i32
    %c0_i32_0 = arith.constant 0 : i32
    %c0_i32_1 = arith.constant 0 : i32
    return %c0_i32, %c0_i32_0 : i32, i32
  }
  func.func @transform_10(%arg0: i32) -> (i32, i32) {
    %c0_i32 = arith.constant 0 : i32
    %c0_i32_0 = arith.constant 0 : i32
    %c0_i32_1 = arith.constant 0 : i32
    return %c0_i32, %c0_i32_0 : i32, i32
  }
  func.func @transform_11(%arg0: i32) -> (i32, i32) {
    %c0_i32 = arith.constant 0 : i32
    %c0_i32_0 = arith.constant 0 : i32
    %c0_i32_1 = arith.constant 0 : i32
    return %c0_i32, %c0_i32_0 : i32, i32
  }
  func.func @transform_12(%arg0: i32) -> (i32, i32, i32) {
    %c0_i32 = arith.constant 0 : i32
    %c0_i32_0 = arith.constant 0 : i32
    %c0_i32_1 = arith.constant 0 : i32
    return %arg0, %c0_i32, %c0_i32_0 : i32, i32, i32
  }
}

</mosaic_0001>

<llo_original>
// kernel: tpu_custom_call.1
$region0: #{tpu_custom_call.1}
  #allocation0 [shape = 'u32[]', space=smem, size = 0x4, offset = 0x4, fixed_abs, tag = 'smem constant byte address 0x4 - core index']
  #allocation1 [shape = 'u32[72,128]{1,0:T(1,128)}', space=vmem, size = 0x9000, scoped, tag = 'internal scratch']
  %s0 = inlined_call_operand.vmem [shape: f32[16,3], index: 0, kind: input, shape index: {}]
  %s1 = inlined_call_operand.vmem [shape: f32[3,16], index: 1, kind: input, shape index: {}]
  %s2 = inlined_call_operand.vmem [shape: f32[8,16], index: 2, kind: input, shape index: {}]
  %s3 = inlined_call_operand.vmem [shape: f32[16,64], index: 3, kind: input, shape index: {}]
  %s4 = inlined_call_operand.vmem [shape: f32[8,32], index: 4, kind: input, shape index: {}]
  %s5 = inlined_call_operand.vmem [shape: f32[32,33], index: 5, kind: input, shape index: {}]
  %s6 = inlined_call_operand.vmem [shape: f32[1,512], index: 6, kind: input, shape index: {}]
  %s7 = inlined_call_operand.hbm [shape: f32[96,2048], index: 7, kind: input, shape index: {}]
  %s8 = inlined_call_operand.vmem [shape: f32[512,32], index: 8, kind: input, shape index: {}]
  %s9 = inlined_call_operand.vmem [shape: f32[16,1], index: 9, kind: input, shape index: {}]
  %s10 = inlined_call_operand.vmem [shape: f32[32,16], index: 10, kind: input, shape index: {}]
  %s11 = inlined_call_operand.vmem [shape: f32[2,18], index: 11, kind: input, shape index: {}]
  %s12 = inlined_call_operand.hbm [shape: f32[1,2,16], index: 12, kind: output, shape index: {}]
  %s13 = sld [smem:[#allocation0]]
  $region62: #{tpu_custom_call.1} parent=0
    _
  %s15 = ssub.s32 1, %s13
  %s16 = scalar_select 0, %s15, %s13
  $region1: #{tpu_custom_call.1} parent=0
    #allocation2 [shape = 'u8[786432]{0}', space=vmem, size = 0xc0000, scoped, tag = 'input window, operand 7, single buffered']
    #allocation3 [shape = 's32[1]{0}', space=sflag, size = 0x4, scoped, tag = 'scoped memory for tpu_custom_call.1']
    #allocation4 [shape = 's32[1]{0}', space=sflag, size = 0x4, scoped, tag = 'scoped memory for tpu_custom_call.1']
    #allocation5 [shape = 'u8[1024]{0}', space=vmem, size = 0x400, scoped, tag = 'output window, operand 0, single buffered']
    %17 = vsyncpa [#allocation3], 0
    %18 = vsyncpa [#allocation4], 0
    // Predicated region
    $region2: #{tpu_custom_call.1} parent=1 // pred_check
      _
    $region3: #{tpu_custom_call.1} parent=1 // pred_check_branch
      %20 = sbr.rel (0) target = $region5
    $region4: #{tpu_custom_call.1} parent=1 // pred_region
      _
    $region5: #{tpu_custom_call.1} parent=1 // pred_fallthru
      _
    // Predicated region
    $region6: #{tpu_custom_call.1} parent=1 // pred_check
      _
    $region7: #{tpu_custom_call.1} parent=1 // pred_check_branch
      %22 = sbr.rel (0) target = $region9
    $region8: #{tpu_custom_call.1} parent=1 // pred_region
      _
    $region9: #{tpu_custom_call.1} parent=1 // pred_fallthru
      _
    // Predicated region
    $region10: #{tpu_custom_call.1} parent=1 // pred_check
      _
    $region11: #{tpu_custom_call.1} parent=1 // pred_check_branch
      %24 = sbr.rel (0) target = $region13
    $region12: #{tpu_custom_call.1} parent=1 // pred_region
      _
    $region13: #{tpu_custom_call.1} parent=1 // pred_fallthru
      _
    // Predicated region
    $region14: #{tpu_custom_call.1} parent=1 // pred_check
      _
    $region15: #{tpu_custom_call.1} parent=1 // pred_check_branch
      %26 = sbr.rel (0) target = $region17
    $region16: #{tpu_custom_call.1} parent=1 // pred_region
      _
    $region17: #{tpu_custom_call.1} parent=1 // pred_fallthru
      _
    // Predicated region
    $region18: #{tpu_custom_call.1} parent=1 // pred_check
      _
    $region19: #{tpu_custom_call.1} parent=1 // pred_check_branch
      %28 = sbr.rel (0) target = $region21
    $region20: #{tpu_custom_call.1} parent=1 // pred_region
      _
    $region21: #{tpu_custom_call.1} parent=1 // pred_fallthru
      _
    // Predicated region
    $region22: #{tpu_custom_call.1} parent=1 // pred_check
      _
    $region23: #{tpu_custom_call.1} parent=1 // pred_check_branch
      %30 = sbr.rel (0) target = $region25
    $region24: #{tpu_custom_call.1} parent=1 // pred_region
      _
    $region25: #{tpu_custom_call.1} parent=1 // pred_fallthru
      _
    // Predicated region
    $region26: #{tpu_custom_call.1} parent=1 // pred_check
      _
    $region27: #{tpu_custom_call.1} parent=1 // pred_check_branch
      %32 = sbr.rel (0) target = $region29
    $region28: #{tpu_custom_call.1} parent=1 // pred_region
      _
    $region29: #{tpu_custom_call.1} parent=1 // pred_fallthru
      _
    // Predicated region
    $region30: #{tpu_custom_call.1} parent=1 // pred_check
      _
    $region31: #{tpu_custom_call.1} parent=1 // pred_check_branch
      %34 = sbr.rel (0) target = $region33
    $region32: #{tpu_custom_call.1} parent=1 // pred_region
      %36 = vsyncadd [#allocation3], 0
      %s37 = sshll.u32 %s7, 4
      %s38 = int_to_ptr.hbm [resolvable:$true] %s37
      %s39 = sshll.u32 [#allocation2], 4
      %s40 = int_to_ptr.vmem [resolvable:$true] %s39
      %45 = dma.hbm_to_vmem [thread:$0]  %s38, 24576, %s40, [#allocation3], 2048, 2048, 128
    $region33: #{tpu_custom_call.1} parent=1 // pred_fallthru
      _
    // Predicated region
    $region34: #{tpu_custom_call.1} parent=1 // pred_check
      _
    $region35: #{tpu_custom_call.1} parent=1 // pred_check_branch
      %47 = sbr.rel (0) target = $region37
    $region36: #{tpu_custom_call.1} parent=1 // pred_region
      _
    $region37: #{tpu_custom_call.1} parent=1 // pred_fallthru
      _
    // Predicated region
    $region38: #{tpu_custom_call.1} parent=1 // pred_check
      _
    $region39: #{tpu_custom_call.1} parent=1 // pred_check_branch
      %49 = sbr.rel (0) target = $region41
    $region40: #{tpu_custom_call.1} parent=1 // pred_region
      _
    $region41: #{tpu_custom_call.1} parent=1 // pred_fallthru
      _
    // Predicated region
    $region42: #{tpu_custom_call.1} parent=1 // pred_check
      _
    $region43: #{tpu_custom_call.1} parent=1 // pred_check_branch
      %51 = sbr.rel (0) target = $region45
    $region44: #{tpu_custom_call.1} parent=1 // pred_region
      _
    $region45: #{tpu_custom_call.1} parent=1 // pred_fallthru
      _
    // Predicated region
    $region46: #{tpu_custom_call.1} parent=1 // pred_check
      _
    $region47: #{tpu_custom_call.1} parent=1 // pred_check_branch
      %53 = sbr.rel (0) target = $region49
    $region48: #{tpu_custom_call.1} parent=1 // pred_region
      _
    $region49: #{tpu_custom_call.1} parent=1 // pred_fallthru
      _
    // Predicated region
    $region50: #{tpu_custom_call.1} parent=1 // pred_check
      _
    $region51: #{tpu_custom_call.1} parent=1 // pred_check_branch
      %55 = sbr.rel (0) target = $region53
    $region52: #{tpu_custom_call.1} parent=1 // pred_region
      %57 = dma.done [#allocation3], 24576
    $region53: #{tpu_custom_call.1} parent=1 // pred_fallthru
      _
    %v58 = vld [vmem:[%s0] sm:$0xff]
    %v59 = vld [vmem:[%s0 + $0x8] sm:$0xff]
    %v60 = vld [vmem:[%s2] sm:$0xff]
    %v61 = vld [vmem:[%s4] sm:$0xff]
    %v62 = vld [vmem:[%s9] sm:$0xff]
    %v63 = vld [vmem:[%s9 + $0x8] sm:$0xff]
    %v64 = vld [vmem:[%s1] sm:$0x7]
    %v65 = vperm.slane %v60, 0
    %vm66 = vcmask 23552
    %v68 = vsel %vm66, %v58, 0
    %v71 = vsel %vm66, %v59, 0
    %vm73 = vcmask 1042432
    %v75 = vsel %vm73, %v64, 0
    %77 = vmatpush.msra.mxu0 0.0
    %78 = vmatpush.msra.mxu0 0.0
    %79 = vmatpush.msra.mxu0 0.0
    %80 = vmatpush.msra.mxu0 0.0
    %81 = vmatpush.msra.mxu0 0.0
    %82 = vmatpush.msra.mxu0 0.0
    %83 = vmatpush.msra.mxu0 0.0
    %84 = vmatpush.msra.mxu0 0.0
    %85 = vmatpush.msra.mxu0 0.0
    %86 = vmatpush.msra.mxu0 0.0
    %87 = vmatpush.msra.mxu0 0.0
    %88 = vmatpush.msra.mxu0 0.0
    %89 = vmatpush.msra.mxu0 0.0
    %90 = vmatpush.msra.mxu0 0.0
    %91 = vmatpush.msra.mxu0 0.0
    %92 = vmatpush.msra.mxu0 %v75
    %93 = vmatmul.f32.gmra.mxu0 %v68
    %v94 = vpop.f32.mrf.mxu0
    %v95 = vadd.f32 %v65, %v94
    %96 = vmatmul.f32.gmra.mxu0 %v71
    %v97 = vpop.f32.mrf.mxu0
    %v98 = vadd.f32 %v65, %v97
    %99 = vdwg.mxu0
    %vm100 = vcmask 130048
    %v101 = vsel %vm100, %v95, 0.0
    %102 = vadd.xlane.f32.xlu0 %v101
    %v103 = vpop.xlane.xlu0 %102
    %v104 = vsel %vm100, %v98, 0.0
    %105 = vadd.xlane.f32.xlu0 %v104
    %v106 = vpop.xlane.xlu0 %105
    %v107 = vrcp.pop 16.0
    %v108 = vmul.f32 16.0, %v107
    %v109 = vsub.f32 1.0, %v108
    %v110 = vmul.f32 %v107, %v109
    %v111 = vadd.f32 %v107, %v110
    %vm112 = vweird.f32 %v107
    %v113 = vsel %vm112, %v107, %v111
    %v114 = vmul.f32 %v103, %v113
    %v115 = vmul.f32 %v106, %v113
    %v116 = vsub.f32 %v95, %v114
    %v117 = vsub.f32 %v98, %v115
    %v118 = vmul.f32 %v116, %v116
    %v119 = vmul.f32 %v117, %v117
    %v120 = vsel %vm100, %v118, 0.0
    %121 = vadd.xlane.f32.xlu0 %v120
    %v122 = vpop.xlane.xlu0 %121
    %v123 = vsel %vm100, %v119, 0.0
    %124 = vadd.xlane.f32.xlu0 %v123
    %v125 = vpop.xlane.xlu0 %124
    %v126 = vmul.f32 %v122, %v113
    %v127 = vmul.f32 %v125, %v113
    %v128 = vadd.f32 %v126, 1e-05
    %v129 = vadd.f32 %v127, 1e-05
    %v130 = vrsqrt.pop %v128
    %v131 = vmul.f32 %v130, %v128
    %v132 = vmul.f32 %v131, %v130
    %v133 = vmul.f32 0.5, %v132
    %v134 = vsub.f32 1.5, %v133
    %v135 = vmul.f32 %v130, %v134
    %vm136 = vweird.f32 %v128
    %vm137 = vweird.f32 %v130
    %vm138 = vmor %vm136, %vm137
    %v139 = vsel %vm138, %v130, %v135
    %v140 = vrsqrt.pop %v129
    %v141 = vmul.f32 %v140, %v129
    %v142 = vmul.f32 %v141, %v140
    %v143 = vmul.f32 0.5, %v142
    %v144 = vsub.f32 1.5, %v143
    %v145 = vmul.f32 %v140, %v144
    %vm146 = vweird.f32 %v129
    %vm147 = vweird.f32 %v140
    %vm148 = vmor %vm146, %vm147
    %v149 = vsel %vm148, %v140, %v145
    %v150 = vmul.f32 %v116, %v139
    %v151 = vmul.f32 %v117, %v149
    %v152 = vperm.slane %v60, 1
    %v153 = vmul.f32 %v150, %v152
    %v154 = vmul.f32 %v151, %v152
    %v155 = vperm.slane %v60, 2
    %v156 = vadd.f32 %v153, %v155
    %v157 = vadd.f32 %v154, %v155
    %v158 = vmul.f32 %v156, %v156
    %v159 = vmul.f32 %v157, %v157
    %v160 = vsel %vm100, %v158, 0.0
    %161 = vadd.xlane.f32.xlu0 %v160
    %v162 = vpop.xlane.xlu0 %161
    %v163 = vsel %vm100, %v159, 0.0
    %164 = vadd.xlane.f32.xlu0 %v163
    %v165 = vpop.xlane.xlu0 %164
    %v166 = vmul.f32 %v162, %v113
    %v167 = vmul.f32 %v165, %v113
    %v168 = vadd.f32 %v166, 1e-05
    %v169 = vadd.f32 %v167, 1e-05
    %v170 = vrsqrt.pop %v168
    %v171 = vmul.f32 %v170, %v168
    %v172 = vmul.f32 %v171, %v170
    %v173 = vmul.f32 0.5, %v172
    %v174 = vsub.f32 1.5, %v173
    %v175 = vmul.f32 %v170, %v174
    %vm176 = vweird.f32 %v168
    %vm177 = vweird.f32 %v170
    %vm178 = vmor %vm176, %vm177
    %v179 = vsel %vm178, %v170, %v175
    %v180 = vrsqrt.pop %v169
    %v181 = vmul.f32 %v180, %v169
    %v182 = vmul.f32 %v181, %v180
    %v183 = vmul.f32 0.5, %v182
    %v184 = vsub.f32 1.5, %v183
    %v185 = vmul.f32 %v180, %v184
    %vm186 = vweird.f32 %v169
    %vm187 = vweird.f32 %v180
    %vm188 = vmor %vm186, %vm187
    %v189 = vsel %vm188, %v180, %v185
    %v190 = vmul.f32 %v156, %v179
    %v191 = vmul.f32 %v157, %v189
    %v192 = vperm.slane %v60, 3
    %v193 = vmul.f32 %v190, %v192
    %v194 = vmul.f32 %v191, %v192
    %v195 = vld [vmem:[%s3] sm:$0xff]
    %v196 = vld [vmem:[%s3 + $0x8] sm:$0xff]
    %v198 = vsel %vm100, %v193, 0
    %v201 = vsel %vm100, %v194, 0
    %203 = vmatpush.msra.mxu0 0.0
    %204 = vmatpush.msra.mxu0 0.0
    %205 = vmatpush.msra.mxu0 0.0
    %206 = vmatpush.msra.mxu0 0.0
    %207 = vmatpush.msra.mxu0 0.0
    %208 = vmatpush.msra.mxu0 0.0
    %209 = vmatpush.msra.mxu0 0.0
    %210 = vmatpush.msra.mxu0 0.0
    %211 = vmatpush.msra.mxu0 0.0
    %212 = vmatpush.msra.mxu0 0.0
    %213 = vmatpush.msra.mxu0 0.0
    %214 = vmatpush.msra.mxu0 0.0
    %215 = vmatpush.msra.mxu0 0.0
    %216 = vmatpush.msra.mxu0 0.0
    %217 = vmatpush.msra.mxu0 %v196
    %218 = vmatpush.msra.mxu0 %v195
    %219 = vmatmul.f32.gmra.mxu0 %v198
    %v220 = vpop.f32.mrf.mxu0
    %v221 = vadd.f32 0.0, %v220
    %222 = vmatmul.f32.gmra.mxu0 %v201
    %v223 = vpop.f32.mrf.mxu0
    %v224 = vadd.f32 0.0, %v223
    %225 = vdwg.mxu0
    %v226 = vperm.slane %v61, 3
    %v227 = vmul.f32 %v226, %v221
    %v228 = vmul.f32 %v226, %v224
    %v229 = vperm.slane %v61, 4
    %v230 = vadd.f32 %v229, %v227
    %v231 = vadd.f32 %v229, %v228
    %vm232 = vcmp.ge.f32.partialorder %v62, 1.0
    %vm233 = vcmp.ge.f32.partialorder %v63, 1.0
    %v234 = vrot.slane %v221, 7
    %v235 = vrot.slane %v224, 7
    %v236 = vlaneseq
    %v237 = vshrl.u32 %v236, 7
    %vm238 = vcmp.lt.s32.totalorder %v237, 1
    %v239 = vsel %vm238, %v234, %v235
    %v240 = vsel %vm238, %v235, %v234
    %v241 = vsel %vm232, 1, 0
    %v242 = vsel %vm233, 1, 0
    %243 = vset.pattern.permute.xlu0 0
    %244 = vperm.xlu0 %243, %v241
    %v245 = vpop.permute.xlu0 %244
    %246 = vset.pattern.permute.xlu0 0
    %247 = vperm.xlu0 %246, %v242
    %v248 = vpop.permute.xlu0 %247
    %vm249 = vcmp.eq.s32.totalorder %v245, 1
    %vm250 = vcmp.eq.s32.totalorder %v248, 1
    %v251 = vsel %vm249, %v240, 0.0
    %v252 = vsel %vm250, %v239, 0.0
    %v253 = vperm.slane %v61, 2
    %v254 = vmul.f32 %v253, %v251
    %v255 = vmul.f32 %v253, %v252
    %v256 = vadd.f32 %v230, %v254
    %v257 = vadd.f32 %v231, %v255
    %vm258 = vcmp.ge.f32.partialorder %v62, 2.0
    %vm259 = vcmp.ge.f32.partialorder %v63, 2.0
    %v260 = vrot.slane %v221, 6
    %v261 = vrot.slane %v224, 6
    %vm262 = vcmp.lt.s32.totalorder %v237, 2
    %v263 = vsel %vm262, %v260, %v261
    %v264 = vsel %vm262, %v261, %v260
    %v265 = vsel %vm258, 1, 0
    %v266 = vsel %vm259, 1, 0
    %267 = vset.pattern.permute.xlu0 0
    %268 = vperm.xlu0 %267, %v265
    %v269 = vpop.permute.xlu0 %268
    %270 = vset.pattern.permute.xlu0 0
    %271 = vperm.xlu0 %270, %v266
    %v272 = vpop.permute.xlu0 %271
    %vm273 = vcmp.eq.s32.totalorder %v269, 1
    %vm274 = vcmp.eq.s32.totalorder %v272, 1
    %v275 = vsel %vm273, %v264, 0.0
    %v276 = vsel %vm274, %v263, 0.0
    %v277 = vperm.slane %v61, 1
    %v278 = vmul.f32 %v277, %v275
    %v279 = vmul.f32 %v277, %v276
    %v280 = vadd.f32 %v256, %v278
    %v281 = vadd.f32 %v257, %v279
    %vm282 = vcmp.ge.f32.partialorder %v62, 3.0
    %vm283 = vcmp.ge.f32.partialorder %v63, 3.0
    %v284 = vrot.slane %v221, 5
    %v285 = vrot.slane %v224, 5
    %vm286 = vcmp.lt.s32.totalorder %v237, 3
    %v287 = vsel %vm286, %v284, %v285
    %v288 = vsel %vm286, %v285, %v284
    %v289 = vsel %vm282, 1, 0
    %v290 = vsel %vm283, 1, 0
    %291 = vset.pattern.permute.xlu0 0
    %292 = vperm.xlu0 %291, %v289
    %v293 = vpop.permute.xlu0 %292
    %294 = vset.pattern.permute.xlu0 0
    %295 = vperm.xlu0 %294, %v290
    %v296 = vpop.permute.xlu0 %295
    %vm297 = vcmp.eq.s32.totalorder %v293, 1
    %vm298 = vcmp.eq.s32.totalorder %v296, 1
    %v299 = vsel %vm297, %v288, 0.0
    %v300 = vsel %vm298, %v287, 0.0
    %v301 = vperm.slane %v61, 0
    %v302 = vmul.f32 %v301, %v299
    %v303 = vmul.f32 %v301, %v300
    %v304 = vadd.f32 %v280, %v302
    %v305 = vadd.f32 %v281, %v303
    %v306 = vsub.f32 0.0, %v304
    %v307 = vsub.f32 0.0, %v305
    %v308 = vmul.f32 %v306, 1.442695
    %v309 = vpow.pop %v308
    %v310 = vmul.f32 %v307, 1.442695
    %v311 = vpow.pop %v310
    %v312 = vadd.f32 %v309, 1.0
    %v313 = vadd.f32 %v311, 1.0
    %v314 = vrcp.pop %v312
    %v315 = vmul.f32 %v312, %v314
    %v316 = vsub.f32 1.0, %v315
    %v317 = vmul.f32 %v314, %v316
    %v318 = vadd.f32 %v314, %v317
    %vm319 = vweird.f32 %v312
    %vm320 = vweird.f32 %v314
    %vm321 = vmor %vm319, %vm320
    %v322 = vsel %vm321, %v314, %v318
    %v323 = vand.u32 2147483647, %v312
    %vm324 = vcmp.eq.f32.partialorder %v323, 8.507059e+37
    %v325 = vand.u32 %v312, 2147483648
    %v326 = vor.u32 1.1754944e-38, %v325
    %v327 = vsel %vm324, %v326, %v322
    %v328 = vmul.f32 1.0, %v327
    %v329 = vrcp.pop %v313
    %v330 = vmul.f32 %v313, %v329
    %v331 = vsub.f32 1.0, %v330
    %v332 = vmul.f32 %v329, %v331
    %v333 = vadd.f32 %v329, %v332
    %vm334 = vweird.f32 %v313
    %vm335 = vweird.f32 %v329
    %vm336 = vmor %vm334, %vm335
    %v337 = vsel %vm336, %v329, %v333
    %v338 = vand.u32 2147483647, %v313
    %vm339 = vcmp.eq.f32.partialorder %v338, 8.507059e+37
    %v340 = vand.u32 %v313, 2147483648
    %v341 = vor.u32 1.1754944e-38, %v340
    %v342 = vsel %vm339, %v341, %v337
    %v343 = vmul.f32 1.0, %v342
    %v344 = vmul.f32 %v304, %v328
    %v345 = vmul.f32 %v305, %v343
    %v346 = vld [vmem:[%s5] sm:$0xff]
    %v347 = vld [vmem:[%s5 + $0x8] sm:$0xff]
    %v348 = vld [vmem:[%s5 + $0x10] sm:$0xff]
    %v349 = vld [vmem:[%s5 + $0x18] sm:$0xff]
    %vm350 = vcmask 261120
    %v352 = vsel %vm350, %v344, 0
    %v355 = vsel %vm350, %v345, 0
    %357 = vmatpush.msra.mxu0 0.0
    %358 = vmatpush.msra.mxu0 0.0
    %359 = vmatpush.msra.mxu0 0.0
    %360 = vmatpush.msra.mxu0 0.0
    %361 = vmatpush.msra.mxu0 0.0
    %362 = vmatpush.msra.mxu0 0.0
    %363 = vmatpush.msra.mxu0 0.0
    %364 = vmatpush.msra.mxu0 0.0
    %365 = vmatpush.msra.mxu0 0.0
    %366 = vmatpush.msra.mxu0 0.0
    %367 = vmatpush.msra.mxu0 0.0
    %368 = vmatpush.msra.mxu0 0.0
    %369 = vmatpush.msra.mxu0 %v349
    %370 = vmatpush.msra.mxu0 %v348
    %371 = vmatpush.msra.mxu0 %v347
    %372 = vmatpush.msra.mxu0 %v346
    %373 = vmatmul.f32.gmra.mxu0 %v352
    %v374 = vpop.f32.mrf.mxu0
    %v375 = vadd.f32 0.0, %v374
    %376 = vmatmul.f32.gmra.mxu0 %v355
    %v377 = vpop.f32.mrf.mxu0
    %v378 = vadd.f32 0.0, %v377
    %379 = vdwg.mxu0
    %381 = vset.pattern.permute.xlu0 0
    %382 = vperm.xlu0 %381, %v375
    %v383 = vpop.permute.xlu0 %382
    %386 = vset.pattern.permute.xlu0 0
    %387 = vperm.xlu0 %386, %v378
    %v388 = vpop.permute.xlu0 %387
    %v390 = vperm.slane %v61, 5
    %v391 = vmul.f32 %v383, %v390
    %v392 = vmul.f32 %v388, %v390
    %v393 = vperm.slane %v61, 6
    %v394 = vadd.f32 %v391, %v393
    %v395 = vadd.f32 %v392, %v393
    %v396 = vmax.f32 %v394, 0.0
    %v397 = vmax.f32 %v395, 0.0
    %v398 = vand.u32 2147483647, %v394
    %v399 = vand.u32 2147483647, %v395
    %v400 = vsub.f32 0.0, %v398
    %v401 = vsub.f32 0.0, %v399
    %v402 = vmul.f32 %v400, 1.442695
    %v403 = vpow.pop %v402
    %v404 = vmul.f32 %v401, 1.442695
    %v405 = vpow.pop %v404
    %v406 = vadd.f32 %v403, 1.0
    %v407 = vadd.f32 %v405, 1.0
    %v408 = vlog2.pop %v406
    %v409 = vmul.f32 %v408, 0.6931472
    %v410 = vlog2.pop %v407
    %v411 = vmul.f32 %v410, 0.6931472
    %v412 = vadd.f32 %v396, %v409
    %v413 = vadd.f32 %v397, %v411
    %v414 = vmul.f32 %v412, %v344
    %v415 = vmul.f32 %v413, %v345
    %418 = vrot.lane.b32.xlu0 %v414, 32
    %v419 = vpop.permute.xlu0 %418
    %420 = vrot.lane.b32.xlu0 %v415, 32
    %v421 = vpop.permute.xlu0 %420
    %424 = vrot.lane.b32.xlu0 %v375, 63
    %v425 = vpop.permute.xlu0 %424
    %426 = vrot.lane.b32.xlu0 %v378, 63
    %v427 = vpop.permute.xlu0 %426
    %v430 = vsel %vm350, %v412, %v419
    %v431 = vsel %vm350, %v413, %v421
    %vm432 = vcmask 523264
    %v433 = vsel %vm432, %v430, %v425
    %v434 = vsel %vm432, %v431, %v427
    %vm435 = vcmask 654336
    %v436 = vsel %vm435, %v433, %v425
    %v437 = vsel %vm435, %v434, %v427
    %v438 = vld [vmem:[#allocation2] sm:$0xff]
    %v439 = vld [vmem:[#allocation2 + $0x8] sm:$0xff]
    %v440 = vld [vmem:[#allocation2 + $0x10] sm:$0xff]
    %v441 = vld [vmem:[#allocation2 + $0x18] sm:$0xff]
    %v442 = vld [vmem:[#allocation2 + $0x20] sm:$0xff]
    %v443 = vld [vmem:[#allocation2 + $0x28] sm:$0xff]
    %v444 = vld [vmem:[#allocation2 + $0x30] sm:$0xff]
    %v445 = vld [vmem:[#allocation2 + $0x38] sm:$0xff]
    %v446 = vld [vmem:[#allocation2 + $0x40] sm:$0xff]
    %v447 = vld [vmem:[#allocation2 + $0x48] sm:$0xff]
    %v448 = vld [vmem:[#allocation2 + $0x50] sm:$0xff]
    %v449 = vld [vmem:[#allocation2 + $0x58] sm:$0xff]
    %v450 = vld [vmem:[#allocation2 + $0x60] sm:$0xff]
    %v451 = vld [vmem:[#allocation2 + $0x68] sm:$0xff]
    %v452 = vld [vmem:[#allocation2 + $0x70] sm:$0xff]
    %v453 = vld [vmem:[#allocation2 + $0x78] sm:$0xff]
    %v454 = vld [vmem:[#allocation2 + $0x80] sm:$0xff]
    %v455 = vld [vmem:[#allocation2 + $0x88] sm:$0xff]
    %v456 = vld [vmem:[#allocation2 + $0x90] sm:$0xff]
    %v457 = vld [vmem:[#allocation2 + $0x98] sm:$0xff]
    %v458 = vld [vmem:[#allocation2 + $0xa0] sm:$0xff]
    %v459 = vld [vmem:[#allocation2 + $0xa8] sm:$0xff]
    %v460 = vld [vmem:[#allocation2 + $0xb0] sm:$0xff]
    %v461 = vld [vmem:[#allocation2 + $0xb8] sm:$0xff]
    %v462 = vld [vmem:[#allocation2 + $0xc0] sm:$0xff]
    %v463 = vld [vmem:[#allocation2 + $0xc8] sm:$0xff]
    %v464 = vld [vmem:[#allocation2 + $0xd0] sm:$0xff]
    %v465 = vld [vmem:[#allocation2 + $0xd8] sm:$0xff]
    %v466 = vld [vmem:[#allocation2 + $0xe0] sm:$0xff]
    %v467 = vld [vmem:[#allocation2 + $0xe8] sm:$0xff]
    %v468 = vld [vmem:[#allocation2 + $0xf0] sm:$0xff]
    %v469 = vld [vmem:[#allocation2 + $0xf8] sm:$0xff]
    %v470 = vld [vmem:[#allocation2 + $0x100] sm:$0xff]
    %v471 = vld [vmem:[#allocation2 + $0x108] sm:$0xff]
    %v472 = vld [vmem:[#allocation2 + $0x110] sm:$0xff]
    %v473 = vld [vmem:[#allocation2 + $0x118] sm:$0xff]
    %v474 = vld [vmem:[#allocation2 + $0x120] sm:$0xff]
    %v475 = vld [vmem:[#allocation2 + $0x128] sm:$0xff]
    %v476 = vld [vmem:[#allocation2 + $0x130] sm:$0xff]
    %v477 = vld [vmem:[#allocation2 + $0x138] sm:$0xff]
    %v478 = vld [vmem:[#allocation2 + $0x140] sm:$0xff]
    %v479 = vld [vmem:[#allocation2 + $0x148] sm:$0xff]
    %v480 = vld [vmem:[#allocation2 + $0x150] sm:$0xff]
    %v481 = vld [vmem:[#allocation2 + $0x158] sm:$0xff]
    %v482 = vld [vmem:[#allocation2 + $0x160] sm:$0xff]
    %v483 = vld [vmem:[#allocation2 + $0x168] sm:$0xff]
    %v484 = vld [vmem:[#allocation2 + $0x170] sm:$0xff]
    %v485 = vld [vmem:[#allocation2 + $0x178] sm:$0xff]
    %v486 = vld [vmem:[#allocation2 + $0x180] sm:$0xff]
    %v487 = vld [vmem:[#allocation2 + $0x188] sm:$0xff]
    %v488 = vld [vmem:[#allocation2 + $0x190] sm:$0xff]
    %v489 = vld [vmem:[#allocation2 + $0x198] sm:$0xff]
    %v490 = vld [vmem:[#allocation2 + $0x1a0] sm:$0xff]
    %v491 = vld [vmem:[#allocation2 + $0x1a8] sm:$0xff]
    %v492 = vld [vmem:[#allocation2 + $0x1b0] sm:$0xff]
    %v493 = vld [vmem:[#allocation2 + $0x1b8] sm:$0xff]
    %v494 = vld [vmem:[#allocation2 + $0x1c0] sm:$0xff]
    %v495 = vld [vmem:[#allocation2 + $0x1c8] sm:$0xff]
    %v496 = vld [vmem:[#allocation2 + $0x1d0] sm:$0xff]
    %v497 = vld [vmem:[#allocation2 + $0x1d8] sm:$0xff]
    %v498 = vld [vmem:[#allocation2 + $0x1e0] sm:$0xff]
    %v499 = vld [vmem:[#allocation2 + $0x1e8] sm:$0xff]
    %v500 = vld [vmem:[#allocation2 + $0x1f0] sm:$0xff]
    %v501 = vld [vmem:[#allocation2 + $0x1f8] sm:$0xff]
    %v502 = vld [vmem:[#allocation2 + $0x200] sm:$0xff]
    %v503 = vld [vmem:[#allocation2 + $0x208] sm:$0xff]
    %v504 = vld [vmem:[#allocation2 + $0x210] sm:$0xff]
    %v505 = vld [vmem:[#allocation2 + $0x218] sm:$0xff]
    %v506 = vld [vmem:[#allocation2 + $0x220] sm:$0xff]
    %v507 = vld [vmem:[#allocation2 + $0x228] sm:$0xff]
    %v508 = vld [vmem:[#allocation2 + $0x230] sm:$0xff]
    %v509 = vld [vmem:[#allocation2 + $0x238] sm:$0xff]
    %v510 = vld [vmem:[#allocation2 + $0x240] sm:$0xff]
    %v511 = vld [vmem:[#allocation2 + $0x248] sm:$0xff]
    %v512 = vld [vmem:[#allocation2 + $0x250] sm:$0xff]
    %v513 = vld [vmem:[#allocation2 + $0x258] sm:$0xff]
    %v514 = vld [vmem:[#allocation2 + $0x260] sm:$0xff]
    %v515 = vld [vmem:[#allocation2 + $0x268] sm:$0xff]
    %v516 = vld [vmem:[#allocation2 + $0x270] sm:$0xff]
    %v517 = vld [vmem:[#allocation2 + $0x278] sm:$0xff]
    %v518 = vld [vmem:[#allocation2 + $0x280] sm:$0xff]
    %v519 = vld [vmem:[#allocation2 + $0x288] sm:$0xff]
    %v520 = vld [vmem:[#allocation2 + $0x290] sm:$0xff]
    %v521 = vld [vmem:[#allocation2 + $0x298] sm:$0xff]
    %v522 = vld [vmem:[#allocation2 + $0x2a0] sm:$0xff]
    %v523 = vld [vmem:[#allocation2 + $0x2a8] sm:$0xff]
    %v524 = vld [vmem:[#allocation2 + $0x2b0] sm:$0xff]
    %v525 = vld [vmem:[#allocation2 + $0x2b8] sm:$0xff]
    %v526 = vld [vmem:[#allocation2 + $0x2c0] sm:$0xff]
    %v527 = vld [vmem:[#allocation2 + $0x2c8] sm:$0xff]
    %v528 = vld [vmem:[#allocation2 + $0x2d0] sm:$0xff]
    %v529 = vld [vmem:[#allocation2 + $0x2d8] sm:$0xff]
    %v530 = vld [vmem:[#allocation2 + $0x2e0] sm:$0xff]
    %v531 = vld [vmem:[#allocation2 + $0x2e8] sm:$0xff]
    %v532 = vld [vmem:[#allocation2 + $0x2f0] sm:$0xff]
    %v533 = vld [vmem:[#allocation2 + $0x2f8] sm:$0xff]
    %v534 = vld [vmem:[#allocation2 + $0x300] sm:$0xff]
    %v535 = vld [vmem:[#allocation2 + $0x308] sm:$0xff]
    %v536 = vld [vmem:[#allocation2 + $0x310] sm:$0xff]
    %v537 = vld [vmem:[#allocation2 + $0x318] sm:$0xff]
    %v538 = vld [vmem:[#allocation2 + $0x320] sm:$0xff]
    %v539 = vld [vmem:[#allocation2 + $0x328] sm:$0xff]
    %v540 = vld [vmem:[#allocation2 + $0x330] sm:$0xff]
    %v541 = vld [vmem:[#allocation2 + $0x338] sm:$0xff]
    %v542 = vld [vmem:[#allocation2 + $0x340] sm:$0xff]
    %v543 = vld [vmem:[#allocation2 + $0x348] sm:$0xff]
    %v544 = vld [vmem:[#allocation2 + $0x350] sm:$0xff]
    %v545 = vld [vmem:[#allocation2 + $0x358] sm:$0xff]
    %v546 = vld [vmem:[#allocation2 + $0x360] sm:$0xff]
    %v547 = vld [vmem:[#allocation2 + $0x368] sm:$0xff]
    %v548 = vld [vmem:[#allocation2 + $0x370] sm:$0xff]
    %v549 = vld [vmem:[#allocation2 + $0x378] sm:$0xff]
    %v550 = vld [vmem:[#allocation2 + $0x380] sm:$0xff]
    %v551 = vld [vmem:[#allocation2 + $0x388] sm:$0xff]
    %v552 = vld [vmem:[#allocation2 + $0x390] sm:$0xff]
    %v553 = vld [vmem:[#allocation2 + $0x398] sm:$0xff]
    %v554 = vld [vmem:[#allocation2 + $0x3a0] sm:$0xff]
    %v555 = vld [vmem:[#allocation2 + $0x3a8] sm:$0xff]
    %v556 = vld [vmem:[#allocation2 + $0x3b0] sm:$0xff]
    %v557 = vld [vmem:[#allocation2 + $0x3b8] sm:$0xff]
    %v558 = vld [vmem:[#allocation2 + $0x3c0] sm:$0xff]
    %v559 = vld [vmem:[#allocation2 + $0x3c8] sm:$0xff]
    %v560 = vld [vmem:[#allocation2 + $0x3d0] sm:$0xff]
    %v561 = vld [vmem:[#allocation2 + $0x3d8] sm:$0xff]
    %v562 = vld [vmem:[#allocation2 + $0x3e0] sm:$0xff]
    %v563 = vld [vmem:[#allocation2 + $0x3e8] sm:$0xff]
    %v564 = vld [vmem:[#allocation2 + $0x3f0] sm:$0xff]
    %v565 = vld [vmem:[#allocation2 + $0x3f8] sm:$0xff]
    %v566 = vld [vmem:[#allocation2 + $0x400] sm:$0xff]
    %v567 = vld [vmem:[#allocation2 + $0x408] sm:$0xff]
    %v568 = vld [vmem:[#allocation2 + $0x410] sm:$0xff]
    %v569 = vld [vmem:[#allocation2 + $0x418] sm:$0xff]
    %v570 = vld [vmem:[#allocation2 + $0x420] sm:$0xff]
    %v571 = vld [vmem:[#allocation2 + $0x428] sm:$0xff]
    %v572 = vld [vmem:[#allocation2 + $0x430] sm:$0xff]
    %v573 = vld [vmem:[#allocation2 + $0x438] sm:$0xff]
    %v574 = vld [vmem:[#allocation2 + $0x440] sm:$0xff]
    %v575 = vld [vmem:[#allocation2 + $0x448] sm:$0xff]
    %v576 = vld [vmem:[#allocation2 + $0x450] sm:$0xff]
    %v577 = vld [vmem:[#allocation2 + $0x458] sm:$0xff]
    %v578 = vld [vmem:[#allocation2 + $0x460] sm:$0xff]
    %v579 = vld [vmem:[#allocation2 + $0x468] sm:$0xff]
    %v580 = vld [vmem:[#allocation2 + $0x470] sm:$0xff]
    %v581 = vld [vmem:[#allocation2 + $0x478] sm:$0xff]
    %v582 = vld [vmem:[#allocation2 + $0x480] sm:$0xff]
    %v583 = vld [vmem:[#allocation2 + $0x488] sm:$0xff]
    %v584 = vld [vmem:[#allocation2 + $0x490] sm:$0xff]
    %v585 = vld [vmem:[#allocation2 + $0x498] sm:$0xff]
    %v586 = vld [vmem:[#allocation2 + $0x4a0] sm:$0xff]
    %v587 = vld [vmem:[#allocation2 + $0x4a8] sm:$0xff]
    %v588 = vld [vmem:[#allocation2 + $0x4b0] sm:$0xff]
    %v589 = vld [vmem:[#allocation2 + $0x4b8] sm:$0xff]
    %v590 = vld [vmem:[#allocation2 + $0x4c0] sm:$0xff]
    %v591 = vld [vmem:[#allocation2 + $0x4c8] sm:$0xff]
    %v592 = vld [vmem:[#allocation2 + $0x4d0] sm:$0xff]
    %v593 = vld [vmem:[#allocation2 + $0x4d8] sm:$0xff]
    %v594 = vld [vmem:[#allocation2 + $0x4e0] sm:$0xff]
    %v595 = vld [vmem:[#allocation2 + $0x4e8] sm:$0xff]
    %v596 = vld [vmem:[#allocation2 + $0x4f0] sm:$0xff]
    %v597 = vld [vmem:[#allocation2 + $0x4f8] sm:$0xff]
    %v598 = vld [vmem:[#allocation2 + $0x500] sm:$0xff]
    %v599 = vld [vmem:[#allocation2 + $0x508] sm:$0xff]
    %v600 = vld [vmem:[#allocation2 + $0x510] sm:$0xff]
    %v601 = vld [vmem:[#allocation2 + $0x518] sm:$0xff]
    %v602 = vld [vmem:[#allocation2 + $0x520] sm:$0xff]
    %v603 = vld [vmem:[#allocation2 + $0x528] sm:$0xff]
    %v604 = vld [vmem:[#allocation2 + $0x530] sm:$0xff]
    %v605 = vld [vmem:[#allocation2 + $0x538] sm:$0xff]
    %v606 = vld [vmem:[#allocation2 + $0x540] sm:$0xff]
    %v607 = vld [vmem:[#allocation2 + $0x548] sm:$0xff]
    %v608 = vld [vmem:[#allocation2 + $0x550] sm:$0xff]
    %v609 = vld [vmem:[#allocation2 + $0x558] sm:$0xff]
    %v610 = vld [vmem:[#allocation2 + $0x560] sm:$0xff]
    %v611 = vld [vmem:[#allocation2 + $0x568] sm:$0xff]
    %v612 = vld [vmem:[#allocation2 + $0x570] sm:$0xff]
    %v613 = vld [vmem:[#allocation2 + $0x578] sm:$0xff]
    %v614 = vld [vmem:[#allocation2 + $0x580] sm:$0xff]
    %v615 = vld [vmem:[#allocation2 + $0x588] sm:$0xff]
    %v616 = vld [vmem:[#allocation2 + $0x590] sm:$0xff]
    %v617 = vld [vmem:[#allocation2 + $0x598] sm:$0xff]
    %v618 = vld [vmem:[#allocation2 + $0x5a0] sm:$0xff]
    %v619 = vld [vmem:[#allocation2 + $0x5a8] sm:$0xff]
    %v620 = vld [vmem:[#allocation2 + $0x5b0] sm:$0xff]
    %v621 = vld [vmem:[#allocation2 + $0x5b8] sm:$0xff]
    %v622 = vld [vmem:[#allocation2 + $0x5c0] sm:$0xff]
    %v623 = vld [vmem:[#allocation2 + $0x5c8] sm:$0xff]
    %v624 = vld [vmem:[#allocation2 + $0x5d0] sm:$0xff]
    %v625 = vld [vmem:[#allocation2 + $0x5d8] sm:$0xff]
    %v626 = vld [vmem:[#allocation2 + $0x5e0] sm:$0xff]
    %v627 = vld [vmem:[#allocation2 + $0x5e8] sm:$0xff]
    %v628 = vld [vmem:[#allocation2 + $0x5f0] sm:$0xff]
    %v629 = vld [vmem:[#allocation2 + $0x5f8] sm:$0xff]
    %vm630 = vcmask 785408
    %v632 = vsel %vm630, %v436, 0
    %v635 = vsel %vm630, %v437, 0
    %637 = vmatpush.msra.mxu0 0.0
    %638 = vmatpush.msra.mxu0 0.0
    %639 = vmatpush.msra.mxu0 0.0
    %640 = vmatpush.msra.mxu0 0.0
    %641 = vmatpush.msra.mxu0 %v614
    %642 = vmatpush.msra.mxu0 %v598
    %643 = vmatpush.msra.mxu0 %v582
    %644 = vmatpush.msra.mxu0 %v566
    %645 = vmatpush.msra.mxu0 %v550
    %646 = vmatpush.msra.mxu0 %v534
    %647 = vmatpush.msra.mxu0 %v518
    %648 = vmatpush.msra.mxu0 %v502
    %649 = vmatpush.msra.mxu0 %v486
    %650 = vmatpush.msra.mxu0 %v470
    %651 = vmatpush.msra.mxu0 %v454
    %652 = vmatpush.msra.mxu0 %v438
    %653 = vmatmul.f32.gmra.mxu0 %v632
    %v654 = vpop.f32.mrf.mxu0
    %v655 = vadd.f32 0.0, %v654
    %656 = vmatmul.f32.gmra.mxu0 %v635
    %v657 = vpop.f32.mrf.mxu0
    %v658 = vadd.f32 0.0, %v657
    %659 = vdwg.mxu0
    %660 = vmatpush.msra.mxu0 0.0
    %661 = vmatpush.msra.mxu0 0.0
    %662 = vmatpush.msra.mxu0 0.0
    %663 = vmatpush.msra.mxu0 0.0
    %664 = vmatpush.msra.mxu0 %v615
    %665 = vmatpush.msra.mxu0 %v599
    %666 = vmatpush.msra.mxu0 %v583
    %667 = vmatpush.msra.mxu0 %v567
    %668 = vmatpush.msra.mxu0 %v551
    %669 = vmatpush.msra.mxu0 %v535
    %670 = vmatpush.msra.mxu0 %v519
    %671 = vmatpush.msra.mxu0 %v503
    %672 = vmatpush.msra.mxu0 %v487
    %673 = vmatpush.msra.mxu0 %v471
    %674 = vmatpush.msra.mxu0 %v455
    %675 = vmatpush.msra.mxu0 %v439
    %676 = vmatmul.f32.gmra.mxu0 %v632
    %v677 = vpop.f32.mrf.mxu0
    %v678 = vadd.f32 0.0, %v677
    %679 = vmatmul.f32.gmra.mxu0 %v635
    %v680 = vpop.f32.mrf.mxu0
    %v681 = vadd.f32 0.0, %v680
    %682 = vdwg.mxu0
    %683 = vmatpush.msra.mxu0 0.0
    %684 = vmatpush.msra.mxu0 0.0
    %685 = vmatpush.msra.mxu0 0.0
    %686 = vmatpush.msra.mxu0 0.0
    %687 = vmatpush.msra.mxu0 %v616
    %688 = vmatpush.msra.mxu0 %v600
    %689 = vmatpush.msra.mxu0 %v584
    %690 = vmatpush.msra.mxu0 %v568
    %691 = vmatpush.msra.mxu0 %v552
    %692 = vmatpush.msra.mxu0 %v536
    %693 = vmatpush.msra.mxu0 %v520
    %694 = vmatpush.msra.mxu0 %v504
    %695 = vmatpush.msra.mxu0 %v488
    %696 = vmatpush.msra.mxu0 %v472
    %697 = vmatpush.msra.mxu0 %v456
    %698 = vmatpush.msra.mxu0 %v440
    %699 = vmatmul.f32.gmra.mxu0 %v632
    %v700 = vpop.f32.mrf.mxu0
    %v701 = vadd.f32 0.0, %v700
    %702 = vmatmul.f32.gmra.mxu0 %v635
    %v703 = vpop.f32.mrf.mxu0
    %v704 = vadd.f32 0.0, %v703
    %705 = vdwg.mxu0
    %706 = vmatpush.msra.mxu0 0.0
    %707 = vmatpush.msra.mxu0 0.0
    %708 = vmatpush.msra.mxu0 0.0
    %709 = vmatpush.msra.mxu0 0.0
    %710 = vmatpush.msra.mxu0 %v617
    %711 = vmatpush.msra.mxu0 %v601
    %712 = vmatpush.msra.mxu0 %v585
    %713 = vmatpush.msra.mxu0 %v569
    %714 = vmatpush.msra.mxu0 %v553
    %715 = vmatpush.msra.mxu0 %v537
    %716 = vmatpush.msra.mxu0 %v521
    %717 = vmatpush.msra.mxu0 %v505
    %718 = vmatpush.msra.mxu0 %v489
    %719 = vmatpush.msra.mxu0 %v473
    %720 = vmatpush.msra.mxu0 %v457
    %721 = vmatpush.msra.mxu0 %v441
    %722 = vmatmul.f32.gmra.mxu0 %v632
    %v723 = vpop.f32.mrf.mxu0
    %v724 = vadd.f32 0.0, %v723
    %725 = vmatmul.f32.gmra.mxu0 %v635
    %v726 = vpop.f32.mrf.mxu0
    %v727 = vadd.f32 0.0, %v726
    %728 = vdwg.mxu0
    %729 = vmatpush.msra.mxu0 0.0
    %730 = vmatpush.msra.mxu0 0.0
    %731 = vmatpush.msra.mxu0 0.0
    %732 = vmatpush.msra.mxu0 0.0
    %733 = vmatpush.msra.mxu0 %v618
    %734 = vmatpush.msra.mxu0 %v602
    %735 = vmatpush.msra.mxu0 %v586
    %736 = vmatpush.msra.mxu0 %v570
    %737 = vmatpush.msra.mxu0 %v554
    %738 = vmatpush.msra.mxu0 %v538
    %739 = vmatpush.msra.mxu0 %v522
    %740 = vmatpush.msra.mxu0 %v506
    %741 = vmatpush.msra.mxu0 %v490
    %742 = vmatpush.msra.mxu0 %v474
    %743 = vmatpush.msra.mxu0 %v458
    %744 = vmatpush.msra.mxu0 %v442
    %745 = vmatmul.f32.gmra.mxu0 %v632
    %v746 = vpop.f32.mrf.mxu0
    %v747 = vadd.f32 0.0, %v746
    %748 = vmatmul.f32.gmra.mxu0 %v635
    %v749 = vpop.f32.mrf.mxu0
    %v750 = vadd.f32 0.0, %v749
    %751 = vdwg.mxu0
    %752 = vmatpush.msra.mxu0 0.0
    %753 = vmatpush.msra.mxu0 0.0
    %754 = vmatpush.msra.mxu0 0.0
    %755 = vmatpush.msra.mxu0 0.0
    %756 = vmatpush.msra.mxu0 %v619
    %757 = vmatpush.msra.mxu0 %v603
    %758 = vmatpush.msra.mxu0 %v587
    %759 = vmatpush.msra.mxu0 %v571
    %760 = vmatpush.msra.mxu0 %v555
    %761 = vmatpush.msra.mxu0 %v539
    %762 = vmatpush.msra.mxu0 %v523
    %763 = vmatpush.msra.mxu0 %v507
    %764 = vmatpush.msra.mxu0 %v491
    %765 = vmatpush.msra.mxu0 %v475
    %766 = vmatpush.msra.mxu0 %v459
    %767 = vmatpush.msra.mxu0 %v443
    %768 = vmatmul.f32.gmra.mxu0 %v632
    %v769 = vpop.f32.mrf.mxu0
    %v770 = vadd.f32 0.0, %v769
    %771 = vmatmul.f32.gmra.mxu0 %v635
    %v772 = vpop.f32.mrf.mxu0
    %v773 = vadd.f32 0.0, %v772
    %774 = vdwg.mxu0
    %775 = vmatpush.msra.mxu0 0.0
    %776 = vmatpush.msra.mxu0 0.0
    %777 = vmatpush.msra.mxu0 0.0
    %778 = vmatpush.msra.mxu0 0.0
    %779 = vmatpush.msra.mxu0 %v620
    %780 = vmatpush.msra.mxu0 %v604
    %781 = vmatpush.msra.mxu0 %v588
    %782 = vmatpush.msra.mxu0 %v572
    %783 = vmatpush.msra.mxu0 %v556
    %784 = vmatpush.msra.mxu0 %v540
    %785 = vmatpush.msra.mxu0 %v524
    %786 = vmatpush.msra.mxu0 %v508
    %787 = vmatpush.msra.mxu0 %v492
    %788 = vmatpush.msra.mxu0 %v476
    %789 = vmatpush.msra.mxu0 %v460
    %790 = vmatpush.msra.mxu0 %v444
    %791 = vmatmul.f32.gmra.mxu0 %v632
    %v792 = vpop.f32.mrf.mxu0
    %v793 = vadd.f32 0.0, %v792
    %794 = vmatmul.f32.gmra.mxu0 %v635
    %v795 = vpop.f32.mrf.mxu0
    %v796 = vadd.f32 0.0, %v795
    %797 = vdwg.mxu0
    %798 = vmatpush.msra.mxu0 0.0
    %799 = vmatpush.msra.mxu0 0.0
    %800 = vmatpush.msra.mxu0 0.0
    %801 = vmatpush.msra.mxu0 0.0
    %802 = vmatpush.msra.mxu0 %v621
    %803 = vmatpush.msra.mxu0 %v605
    %804 = vmatpush.msra.mxu0 %v589
    %805 = vmatpush.msra.mxu0 %v573
    %806 = vmatpush.msra.mxu0 %v557
    %807 = vmatpush.msra.mxu0 %v541
    %808 = vmatpush.msra.mxu0 %v525
    %809 = vmatpush.msra.mxu0 %v509
    %810 = vmatpush.msra.mxu0 %v493
    %811 = vmatpush.msra.mxu0 %v477
    %812 = vmatpush.msra.mxu0 %v461
    %813 = vmatpush.msra.mxu0 %v445
    %814 = vmatmul.f32.gmra.mxu0 %v632
    %v815 = vpop.f32.mrf.mxu0
    %v816 = vadd.f32 0.0, %v815
    %817 = vmatmul.f32.gmra.mxu0 %v635
    %v818 = vpop.f32.mrf.mxu0
    %v819 = vadd.f32 0.0, %v818
    %820 = vdwg.mxu0
    %821 = vmatpush.msra.mxu0 0.0
    %822 = vmatpush.msra.mxu0 0.0
    %823 = vmatpush.msra.mxu0 0.0
    %824 = vmatpush.msra.mxu0 0.0
    %825 = vmatpush.msra.mxu0 %v622
    %826 = vmatpush.msra.mxu0 %v606
    %827 = vmatpush.msra.mxu0 %v590
    %828 = vmatpush.msra.mxu0 %v574
    %829 = vmatpush.msra.mxu0 %v558
    %830 = vmatpush.msra.mxu0 %v542
    %831 = vmatpush.msra.mxu0 %v526
    %832 = vmatpush.msra.mxu0 %v510
    %833 = vmatpush.msra.mxu0 %v494
    %834 = vmatpush.msra.mxu0 %v478
    %835 = vmatpush.msra.mxu0 %v462
    %836 = vmatpush.msra.mxu0 %v446
    %837 = vmatmul.f32.gmra.mxu0 %v632
    %v838 = vpop.f32.mrf.mxu0
    %v839 = vadd.f32 0.0, %v838
    %840 = vmatmul.f32.gmra.mxu0 %v635
    %v841 = vpop.f32.mrf.mxu0
    %v842 = vadd.f32 0.0, %v841
    %843 = vdwg.mxu0
    %844 = vmatpush.msra.mxu0 0.0
    %845 = vmatpush.msra.mxu0 0.0
    %846 = vmatpush.msra.mxu0 0.0
    %847 = vmatpush.msra.mxu0 0.0
    %848 = vmatpush.msra.mxu0 %v623
    %849 = vmatpush.msra.mxu0 %v607
    %850 = vmatpush.msra.mxu0 %v591
    %851 = vmatpush.msra.mxu0 %v575
    %852 = vmatpush.msra.mxu0 %v559
    %853 = vmatpush.msra.mxu0 %v543
    %854 = vmatpush.msra.mxu0 %v527
    %855 = vmatpush.msra.mxu0 %v511
    %856 = vmatpush.msra.mxu0 %v495
    %857 = vmatpush.msra.mxu0 %v479
    %858 = vmatpush.msra.mxu0 %v463
    %859 = vmatpush.msra.mxu0 %v447
    %860 = vmatmul.f32.gmra.mxu0 %v632
    %v861 = vpop.f32.mrf.mxu0
    %v862 = vadd.f32 0.0, %v861
    %863 = vmatmul.f32.gmra.mxu0 %v635
    %v864 = vpop.f32.mrf.mxu0
    %v865 = vadd.f32 0.0, %v864
    %866 = vdwg.mxu0
    %867 = vmatpush.msra.mxu0 0.0
    %868 = vmatpush.msra.mxu0 0.0
    %869 = vmatpush.msra.mxu0 0.0
    %870 = vmatpush.msra.mxu0 0.0
    %871 = vmatpush.msra.mxu0 %v624
    %872 = vmatpush.msra.mxu0 %v608
    %873 = vmatpush.msra.mxu0 %v592
    %874 = vmatpush.msra.mxu0 %v576
    %875 = vmatpush.msra.mxu0 %v560
    %876 = vmatpush.msra.mxu0 %v544
    %877 = vmatpush.msra.mxu0 %v528
    %878 = vmatpush.msra.mxu0 %v512
    %879 = vmatpush.msra.mxu0 %v496
    %880 = vmatpush.msra.mxu0 %v480
    %881 = vmatpush.msra.mxu0 %v464
    %882 = vmatpush.msra.mxu0 %v448
    %883 = vmatmul.f32.gmra.mxu0 %v632
    %v884 = vpop.f32.mrf.mxu0
    %v885 = vadd.f32 0.0, %v884
    %886 = vmatmul.f32.gmra.mxu0 %v635
    %v887 = vpop.f32.mrf.mxu0
    %v888 = vadd.f32 0.0, %v887
    %889 = vdwg.mxu0
    %890 = vmatpush.msra.mxu0 0.0
    %891 = vmatpush.msra.mxu0 0.0
    %892 = vmatpush.msra.mxu0 0.0
    %893 = vmatpush.msra.mxu0 0.0
    %894 = vmatpush.msra.mxu0 %v625
    %895 = vmatpush.msra.mxu0 %v609
    %896 = vmatpush.msra.mxu0 %v593
    %897 = vmatpush.msra.mxu0 %v577
    %898 = vmatpush.msra.mxu0 %v561
    %899 = vmatpush.msra.mxu0 %v545
    %900 = vmatpush.msra.mxu0 %v529
    %901 = vmatpush.msra.mxu0 %v513
    %902 = vmatpush.msra.mxu0 %v497
    %903 = vmatpush.msra.mxu0 %v481
    %904 = vmatpush.msra.mxu0 %v465
    %905 = vmatpush.msra.mxu0 %v449
    %906 = vmatmul.f32.gmra.mxu0 %v632
    %v907 = vpop.f32.mrf.mxu0
    %v908 = vadd.f32 0.0, %v907
    %909 = vmatmul.f32.gmra.mxu0 %v635
    %v910 = vpop.f32.mrf.mxu0
    %v911 = vadd.f32 0.0, %v910
    %912 = vdwg.mxu0
    %913 = vmatpush.msra.mxu0 0.0
    %914 = vmatpush.msra.mxu0 0.0
    %915 = vmatpush.msra.mxu0 0.0
    %916 = vmatpush.msra.mxu0 0.0
    %917 = vmatpush.msra.mxu0 %v626
    %918 = vmatpush.msra.mxu0 %v610
    %919 = vmatpush.msra.mxu0 %v594
    %920 = vmatpush.msra.mxu0 %v578
    %921 = vmatpush.msra.mxu0 %v562
    %922 = vmatpush.msra.mxu0 %v546
    %923 = vmatpush.msra.mxu0 %v530
    %924 = vmatpush.msra.mxu0 %v514
    %925 = vmatpush.msra.mxu0 %v498
    %926 = vmatpush.msra.mxu0 %v482
    %927 = vmatpush.msra.mxu0 %v466
    %928 = vmatpush.msra.mxu0 %v450
    %929 = vmatmul.f32.gmra.mxu0 %v632
    %v930 = vpop.f32.mrf.mxu0
    %v931 = vadd.f32 0.0, %v930
    %932 = vmatmul.f32.gmra.mxu0 %v635
    %v933 = vpop.f32.mrf.mxu0
    %v934 = vadd.f32 0.0, %v933
    %935 = vdwg.mxu0
    %936 = vmatpush.msra.mxu0 0.0
    %937 = vmatpush.msra.mxu0 0.0
    %938 = vmatpush.msra.mxu0 0.0
    %939 = vmatpush.msra.mxu0 0.0
    %940 = vmatpush.msra.mxu0 %v627
    %941 = vmatpush.msra.mxu0 %v611
    %942 = vmatpush.msra.mxu0 %v595
    %943 = vmatpush.msra.mxu0 %v579
    %944 = vmatpush.msra.mxu0 %v563
    %945 = vmatpush.msra.mxu0 %v547
    %946 = vmatpush.msra.mxu0 %v531
    %947 = vmatpush.msra.mxu0 %v515
    %948 = vmatpush.msra.mxu0 %v499
    %949 = vmatpush.msra.mxu0 %v483
    %950 = vmatpush.msra.mxu0 %v467
    %951 = vmatpush.msra.mxu0 %v451
    %952 = vmatmul.f32.gmra.mxu0 %v632
    %v953 = vpop.f32.mrf.mxu0
    %v954 = vadd.f32 0.0, %v953
    %955 = vmatmul.f32.gmra.mxu0 %v635
    %v956 = vpop.f32.mrf.mxu0
    %v957 = vadd.f32 0.0, %v956
    %958 = vdwg.mxu0
    %959 = vmatpush.msra.mxu0 0.0
    %960 = vmatpush.msra.mxu0 0.0
    %961 = vmatpush.msra.mxu0 0.0
    %962 = vmatpush.msra.mxu0 0.0
    %963 = vmatpush.msra.mxu0 %v628
    %964 = vmatpush.msra.mxu0 %v612
    %965 = vmatpush.msra.mxu0 %v596
    %966 = vmatpush.msra.mxu0 %v580
    %967 = vmatpush.msra.mxu0 %v564
    %968 = vmatpush.msra.mxu0 %v548
    %969 = vmatpush.msra.mxu0 %v532
    %970 = vmatpush.msra.mxu0 %v516
    %971 = vmatpush.msra.mxu0 %v500
    %972 = vmatpush.msra.mxu0 %v484
    %973 = vmatpush.msra.mxu0 %v468
    %974 = vmatpush.msra.mxu0 %v452
    %975 = vmatmul.f32.gmra.mxu0 %v632
    %v976 = vpop.f32.mrf.mxu0
    %v977 = vadd.f32 0.0, %v976
    %978 = vmatmul.f32.gmra.mxu0 %v635
    %v979 = vpop.f32.mrf.mxu0
    %v980 = vadd.f32 0.0, %v979
    %981 = vdwg.mxu0
    %982 = vmatpush.msra.mxu0 0.0
    %983 = vmatpush.msra.mxu0 0.0
    %984 = vmatpush.msra.mxu0 0.0
    %985 = vmatpush.msra.mxu0 0.0
    %986 = vmatpush.msra.mxu0 %v629
    %987 = vmatpush.msra.mxu0 %v613
    %988 = vmatpush.msra.mxu0 %v597
    %989 = vmatpush.msra.mxu0 %v581
    %990 = vmatpush.msra.mxu0 %v565
    %991 = vmatpush.msra.mxu0 %v549
    %992 = vmatpush.msra.mxu0 %v533
    %993 = vmatpush.msra.mxu0 %v517
    %994 = vmatpush.msra.mxu0 %v501
    %995 = vmatpush.msra.mxu0 %v485
    %996 = vmatpush.msra.mxu0 %v469
    %997 = vmatpush.msra.mxu0 %v453
    %998 = vmatmul.f32.gmra.mxu0 %v632
    %v999 = vpop.f32.mrf.mxu0
    %v1000 = vadd.f32 0.0, %v999
    %1001 = vmatmul.f32.gmra.mxu0 %v635
    %v1002 = vpop.f32.mrf.mxu0
    %v1003 = vadd.f32 0.0, %v1002
    %1004 = vdwg.mxu0
    %v1005 = vld [vmem:[%s6] sm:$0xf]
    %v1006 = vmul.f32 %v1005, 1.442695
    %v1007 = vpow.pop %v1006
    %v1008 = vsub.f32 0.0, %v1007
    %v1010 = vperm.slane %v1008, 0
    %v1011 = vperm.slane %v1008, 1
    %v1012 = vperm.slane %v1008, 2
    %v1013 = vperm.slane %v1008, 3
    %v1018 = vmul.f32 %v655, %v1010
    %v1019 = vmul.f32 %v678, %v1011
    %v1020 = vmul.f32 %v701, %v1012
    %v1021 = vmul.f32 %v724, %v1013
    %v1022 = vmul.f32 %v658, %v1010
    %v1023 = vmul.f32 %v681, %v1011
    %v1024 = vmul.f32 %v704, %v1012
    %v1025 = vmul.f32 %v727, %v1013
    %v1026 = vmul.f32 %v1018, 1.442695
    %v1027 = vpow.pop %v1026
    %v1028 = vmul.f32 %v1019, 1.442695
    %v1029 = vpow.pop %v1028
    %v1030 = vmul.f32 %v1020, 1.442695
    %v1031 = vpow.pop %v1030
    %v1032 = vmul.f32 %v1021, 1.442695
    %v1033 = vpow.pop %v1032
    %v1034 = vmul.f32 %v1022, 1.442695
    %v1035 = vpow.pop %v1034
    %v1036 = vmul.f32 %v1023, 1.442695
    %v1037 = vpow.pop %v1036
    %v1038 = vmul.f32 %v1024, 1.442695
    %v1039 = vpow.pop %v1038
    %v1040 = vmul.f32 %v1025, 1.442695
    %v1041 = vpow.pop %v1040
    %v1042 = vmul.f32 %v747, %v839
    %v1043 = vmul.f32 %v770, %v862
    %v1044 = vmul.f32 %v793, %v885
    %v1045 = vmul.f32 %v816, %v908
    %v1046 = vmul.f32 %v750, %v842
    %v1047 = vmul.f32 %v773, %v865
    %v1048 = vmul.f32 %v796, %v888
    %v1049 = vmul.f32 %v819, %v911
    %v1050 = vrot.slane %v1027, 7
    %v1051 = vrot.slane %v1029, 7
    %v1052 = vrot.slane %v1031, 7
    %v1053 = vrot.slane %v1033, 7
    %v1054 = vrot.slane %v1035, 7
    %v1055 = vrot.slane %v1037, 7
    %v1056 = vrot.slane %v1039, 7
    %v1057 = vrot.slane %v1041, 7
    %v1058 = vsel %vm238, %v1050, %v1054
    %v1059 = vsel %vm238, %v1051, %v1055
    %v1060 = vsel %vm238, %v1052, %v1056
    %v1061 = vsel %vm238, %v1053, %v1057
    %v1062 = vsel %vm238, %v1054, %v1050
    %v1063 = vsel %vm238, %v1055, %v1051
    %v1064 = vsel %vm238, %v1056, %v1052
    %v1065 = vsel %vm238, %v1057, %v1053
    %v1066 = vsel %vm249, %v1062, 1.0
    %v1067 = vsel %vm249, %v1063, 1.0
    %v1068 = vsel %vm249, %v1064, 1.0
    %v1069 = vsel %vm249, %v1065, 1.0
    %v1070 = vsel %vm250, %v1058, 1.0
    %v1071 = vsel %vm250, %v1059, 1.0
    %v1072 = vsel %vm250, %v1060, 1.0
    %v1073 = vsel %vm250, %v1061, 1.0
    %v1074 = vrot.slane %v1042, 7
    %v1075 = vrot.slane %v1043, 7
    %v1076 = vrot.slane %v1044, 7
    %v1077 = vrot.slane %v1045, 7
    %v1078 = vrot.slane %v1046, 7
    %v1079 = vrot.slane %v1047, 7
    %v1080 = vrot.slane %v1048, 7
    %v1081 = vrot.slane %v1049, 7
    %v1082 = vsel %vm238, %v1074, %v1078
    %v1083 = vsel %vm238, %v1075, %v1079
    %v1084 = vsel %vm238, %v1076, %v1080
    %v1085 = vsel %vm238, %v1077, %v1081
    %v1086 = vsel %vm238, %v1078, %v1074
    %v1087 = vsel %vm238, %v1079, %v1075
    %v1088 = vsel %vm238, %v1080, %v1076
    %v1089 = vsel %vm238, %v1081, %v1077
    %v1090 = vsel %vm249, %v1086, 0.0
    %v1091 = vsel %vm249, %v1087, 0.0
    %v1092 = vsel %vm249, %v1088, 0.0
    %v1093 = vsel %vm249, %v1089, 0.0
    %v1094 = vsel %vm250, %v1082, 0.0
    %v1095 = vsel %vm250, %v1083, 0.0
    %v1096 = vsel %vm250, %v1084, 0.0
    %v1097 = vsel %vm250, %v1085, 0.0
    %v1098 = vmul.f32 %v1027, %v1090
    %v1099 = vmul.f32 %v1029, %v1091
    %v1100 = vmul.f32 %v1031, %v1092
    %v1101 = vmul.f32 %v1033, %v1093
    %v1102 = vmul.f32 %v1035, %v1094
    %v1103 = vmul.f32 %v1037, %v1095
    %v1104 = vmul.f32 %v1039, %v1096
    %v1105 = vmul.f32 %v1041, %v1097
    %v1106 = vadd.f32 %v1098, %v1042
    %v1107 = vadd.f32 %v1099, %v1043
    %v1108 = vadd.f32 %v1100, %v1044
    %v1109 = vadd.f32 %v1101, %v1045
    %v1110 = vadd.f32 %v1102, %v1046
    %v1111 = vadd.f32 %v1103, %v1047
    %v1112 = vadd.f32 %v1104, %v1048
    %v1113 = vadd.f32 %v1105, %v1049
    %v1114 = vmul.f32 %v1027, %v1066
    %v1115 = vmul.f32 %v1029, %v1067
    %v1116 = vmul.f32 %v1031, %v1068
    %v1117 = vmul.f32 %v1033, %v1069
    %v1118 = vmul.f32 %v1035, %v1070
    %v1119 = vmul.f32 %v1037, %v1071
    %v1120 = vmul.f32 %v1039, %v1072
    %v1121 = vmul.f32 %v1041, %v1073
    %v1122 = vrot.slane %v1114, 6
    %v1123 = vrot.slane %v1115, 6
    %v1124 = vrot.slane %v1116, 6
    %v1125 = vrot.slane %v1117, 6
    %v1126 = vrot.slane %v1118, 6
    %v1127 = vrot.slane %v1119, 6
    %v1128 = vrot.slane %v1120, 6
    %v1129 = vrot.slane %v1121, 6
    %v1130 = vsel %vm262, %v1122, %v1126
    %v1131 = vsel %vm262, %v1123, %v1127
    %v1132 = vsel %vm262, %v1124, %v1128
    %v1133 = vsel %vm262, %v1125, %v1129
    %v1134 = vsel %vm262, %v1126, %v1122
    %v1135 = vsel %vm262, %v1127, %v1123
    %v1136 = vsel %vm262, %v1128, %v1124
    %v1137 = vsel %vm262, %v1129, %v1125
    %v1138 = vsel %vm273, %v1134, 1.0
    %v1139 = vsel %vm273, %v1135, 1.0
    %v1140 = vsel %vm273, %v1136, 1.0
    %v1141 = vsel %vm273, %v1137, 1.0
    %v1142 = vsel %vm274, %v1130, 1.0
    %v1143 = vsel %vm274, %v1131, 1.0
    %v1144 = vsel %vm274, %v1132, 1.0
    %v1145 = vsel %vm274, %v1133, 1.0
    %v1146 = vrot.slane %v1106, 6
    %v1147 = vrot.slane %v1107, 6
    %v1148 = vrot.slane %v1108, 6
    %v1149 = vrot.slane %v1109, 6
    %v1150 = vrot.slane %v1110, 6
    %v1151 = vrot.slane %v1111, 6
    %v1152 = vrot.slane %v1112, 6
    %v1153 = vrot.slane %v1113, 6
    %v1154 = vsel %vm262, %v1146, %v1150
    %v1155 = vsel %vm262, %v1147, %v1151
    %v1156 = vsel %vm262, %v1148, %v1152
    %v1157 = vsel %vm262, %v1149, %v1153
    %v1158 = vsel %vm262, %v1150, %v1146
    %v1159 = vsel %vm262, %v1151, %v1147
    %v1160 = vsel %vm262, %v1152, %v1148
    %v1161 = vsel %vm262, %v1153, %v1149
    %v1162 = vsel %vm273, %v1158, 0.0
    %v1163 = vsel %vm273, %v1159, 0.0
    %v1164 = vsel %vm273, %v1160, 0.0
    %v1165 = vsel %vm273, %v1161, 0.0
    %v1166 = vsel %vm274, %v1154, 0.0
    %v1167 = vsel %vm274, %v1155, 0.0
    %v1168 = vsel %vm274, %v1156, 0.0
    %v1169 = vsel %vm274, %v1157, 0.0
    %v1170 = vmul.f32 %v1114, %v1162
    %v1171 = vmul.f32 %v1115, %v1163
    %v1172 = vmul.f32 %v1116, %v1164
    %v1173 = vmul.f32 %v1117, %v1165
    %v1174 = vmul.f32 %v1118, %v1166
    %v1175 = vmul.f32 %v1119, %v1167
    %v1176 = vmul.f32 %v1120, %v1168
    %v1177 = vmul.f32 %v1121, %v1169
    %v1178 = vadd.f32 %v1170, %v1106
    %v1179 = vadd.f32 %v1171, %v1107
    %v1180 = vadd.f32 %v1172, %v1108
    %v1181 = vadd.f32 %v1173, %v1109
    %v1182 = vadd.f32 %v1174, %v1110
    %v1183 = vadd.f32 %v1175, %v1111
    %v1184 = vadd.f32 %v1176, %v1112
    %v1185 = vadd.f32 %v1177, %v1113
    %v1186 = vmul.f32 %v1114, %v1138
    %v1187 = vmul.f32 %v1115, %v1139
    %v1188 = vmul.f32 %v1116, %v1140
    %v1189 = vmul.f32 %v1117, %v1141
    %v1190 = vmul.f32 %v1118, %v1142
    %v1191 = vmul.f32 %v1119, %v1143
    %v1192 = vmul.f32 %v1120, %v1144
    %v1193 = vmul.f32 %v1121, %v1145
    %vm1194 = vcmp.ge.f32.partialorder %v62, 4.0
    %vm1195 = vcmp.ge.f32.partialorder %v63, 4.0
    %v1196 = vrot.slane %v1178, 4
    %v1197 = vrot.slane %v1179, 4
    %v1198 = vrot.slane %v1180, 4
    %v1199 = vrot.slane %v1181, 4
    %v1200 = vrot.slane %v1182, 4
    %v1201 = vrot.slane %v1183, 4
    %v1202 = vrot.slane %v1184, 4
    %v1203 = vrot.slane %v1185, 4
    %vm1204 = vcmp.lt.s32.totalorder %v237, 4
    %v1205 = vsel %vm1204, %v1196, %v1200
    %v1206 = vsel %vm1204, %v1197, %v1201
    %v1207 = vsel %vm1204, %v1198, %v1202
    %v1208 = vsel %vm1204, %v1199, %v1203
    %v1209 = vsel %vm1204, %v1200, %v1196
    %v1210 = vsel %vm1204, %v1201, %v1197
    %v1211 = vsel %vm1204, %v1202, %v1198
    %v1212 = vsel %vm1204, %v1203, %v1199
    %v1213 = vsel %vm1194, 1, 0
    %v1214 = vsel %vm1195, 1, 0
    %1215 = vset.pattern.permute.xlu0 0
    %1216 = vperm.xlu0 %1215, %v1213
    %v1217 = vpop.permute.xlu0 %1216
    %1218 = vset.pattern.permute.xlu0 0
    %1219 = vperm.xlu0 %1218, %v1214
    %v1220 = vpop.permute.xlu0 %1219
    %vm1221 = vcmp.eq.s32.totalorder %v1217, 1
    %vm1222 = vcmp.eq.s32.totalorder %v1220, 1
    %v1223 = vsel %vm1221, %v1209, 0.0
    %v1224 = vsel %vm1221, %v1210, 0.0
    %v1225 = vsel %vm1221, %v1211, 0.0
    %v1226 = vsel %vm1221, %v1212, 0.0
    %v1227 = vsel %vm1222, %v1205, 0.0
    %v1228 = vsel %vm1222, %v1206, 0.0
    %v1229 = vsel %vm1222, %v1207, 0.0
    %v1230 = vsel %vm1222, %v1208, 0.0
    %v1231 = vmul.f32 %v1186, %v1223
    %v1232 = vmul.f32 %v1187, %v1224
    %v1233 = vmul.f32 %v1188, %v1225
    %v1234 = vmul.f32 %v1189, %v1226
    %v1235 = vmul.f32 %v1190, %v1227
    %v1236 = vmul.f32 %v1191, %v1228
    %v1237 = vmul.f32 %v1192, %v1229
    %v1238 = vmul.f32 %v1193, %v1230
    %v1239 = vadd.f32 %v1231, %v1178
    %v1240 = vadd.f32 %v1232, %v1179
    %v1241 = vadd.f32 %v1233, %v1180
    %v1242 = vadd.f32 %v1234, %v1181
    %v1243 = vadd.f32 %v1235, %v1182
    %v1244 = vadd.f32 %v1236, %v1183
    %v1245 = vadd.f32 %v1237, %v1184
    %v1246 = vadd.f32 %v1238, %v1185
    %v1247 = vmul.f32 %v1239, %v931
    %v1248 = vmul.f32 %v1240, %v954
    %v1249 = vmul.f32 %v1241, %v977
    %v1250 = vmul.f32 %v1242, %v1000
    %v1251 = vmul.f32 %v1243, %v934
    %v1252 = vmul.f32 %v1244, %v957
    %v1253 = vmul.f32 %v1245, %v980
    %v1254 = vmul.f32 %v1246, %v1003
    %v1255 = vld [vmem:[%s8] sm:$0xff]
    %v1256 = vld [vmem:[%s8 + $0x8] sm:$0xff]
    %v1257 = vld [vmem:[%s8 + $0x10] sm:$0xff]
    %v1258 = vld [vmem:[%s8 + $0x18] sm:$0xff]
    %v1259 = vld [vmem:[%s8 + $0x20] sm:$0xff]
    %v1260 = vld [vmem:[%s8 + $0x28] sm:$0xff]
    %v1261 = vld [vmem:[%s8 + $0x30] sm:$0xff]
    %v1262 = vld [vmem:[%s8 + $0x38] sm:$0xff]
    %v1263 = vld [vmem:[%s8 + $0x40] sm:$0xff]
    %v1264 = vld [vmem:[%s8 + $0x48] sm:$0xff]
    %v1265 = vld [vmem:[%s8 + $0x50] sm:$0xff]
    %v1266 = vld [vmem:[%s8 + $0x58] sm:$0xff]
    %v1267 = vld [vmem:[%s8 + $0x60] sm:$0xff]
    %v1268 = vld [vmem:[%s8 + $0x68] sm:$0xff]
    %v1269 = vld [vmem:[%s8 + $0x70] sm:$0xff]
    %v1270 = vld [vmem:[%s8 + $0x78] sm:$0xff]
    %v1271 = vld [vmem:[%s8 + $0x80] sm:$0xff]
    %v1272 = vld [vmem:[%s8 + $0x88] sm:$0xff]
    %v1273 = vld [vmem:[%s8 + $0x90] sm:$0xff]
    %v1274 = vld [vmem:[%s8 + $0x98] sm:$0xff]
    %v1275 = vld [vmem:[%s8 + $0xa0] sm:$0xff]
    %v1276 = vld [vmem:[%s8 + $0xa8] sm:$0xff]
    %v1277 = vld [vmem:[%s8 + $0xb0] sm:$0xff]
    %v1278 = vld [vmem:[%s8 + $0xb8] sm:$0xff]
    %v1279 = vld [vmem:[%s8 + $0xc0] sm:$0xff]
    %v1280 = vld [vmem:[%s8 + $0xc8] sm:$0xff]
    %v1281 = vld [vmem:[%s8 + $0xd0] sm:$0xff]
    %v1282 = vld [vmem:[%s8 + $0xd8] sm:$0xff]
    %v1283 = vld [vmem:[%s8 + $0xe0] sm:$0xff]
    %v1284 = vld [vmem:[%s8 + $0xe8] sm:$0xff]
    %v1285 = vld [vmem:[%s8 + $0xf0] sm:$0xff]
    %v1286 = vld [vmem:[%s8 + $0xf8] sm:$0xff]
    %v1287 = vld [vmem:[%s8 + $0x100] sm:$0xff]
    %v1288 = vld [vmem:[%s8 + $0x108] sm:$0xff]
    %v1289 = vld [vmem:[%s8 + $0x110] sm:$0xff]
    %v1290 = vld [vmem:[%s8 + $0x118] sm:$0xff]
    %v1291 = vld [vmem:[%s8 + $0x120] sm:$0xff]
    %v1292 = vld [vmem:[%s8 + $0x128] sm:$0xff]
    %v1293 = vld [vmem:[%s8 + $0x130] sm:$0xff]
    %v1294 = vld [vmem:[%s8 + $0x138] sm:$0xff]
    %v1295 = vld [vmem:[%s8 + $0x140] sm:$0xff]
    %v1296 = vld [vmem:[%s8 + $0x148] sm:$0xff]
    %v1297 = vld [vmem:[%s8 + $0x150] sm:$0xff]
    %v1298 = vld [vmem:[%s8 + $0x158] sm:$0xff]
    %v1299 = vld [vmem:[%s8 + $0x160] sm:$0xff]
    %v1300 = vld [vmem:[%s8 + $0x168] sm:$0xff]
    %v1301 = vld [vmem:[%s8 + $0x170] sm:$0xff]
    %v1302 = vld [vmem:[%s8 + $0x178] sm:$0xff]
    %v1303 = vld [vmem:[%s8 + $0x180] sm:$0xff]
    %v1304 = vld [vmem:[%s8 + $0x188] sm:$0xff]
    %v1305 = vld [vmem:[%s8 + $0x190] sm:$0xff]
    %v1306 = vld [vmem:[%s8 + $0x198] sm:$0xff]
    %v1307 = vld [vmem:[%s8 + $0x1a0] sm:$0xff]
    %v1308 = vld [vmem:[%s8 + $0x1a8] sm:$0xff]
    %v1309 = vld [vmem:[%s8 + $0x1b0] sm:$0xff]
    %v1310 = vld [vmem:[%s8 + $0x1b8] sm:$0xff]
    %v1311 = vld [vmem:[%s8 + $0x1c0] sm:$0xff]
    %v1312 = vld [vmem:[%s8 + $0x1c8] sm:$0xff]
    %v1313 = vld [vmem:[%s8 + $0x1d0] sm:$0xff]
    %v1314 = vld [vmem:[%s8 + $0x1d8] sm:$0xff]
    %v1315 = vld [vmem:[%s8 + $0x1e0] sm:$0xff]
    %v1316 = vld [vmem:[%s8 + $0x1e8] sm:$0xff]
    %v1317 = vld [vmem:[%s8 + $0x1f0] sm:$0xff]
    %v1318 = vld [vmem:[%s8 + $0x1f8] sm:$0xff]
    %v1319 = vperm.slane %v61, 7
    %v1320 = vmul.f32 %v1319, %v344
    %v1321 = vmul.f32 %v1319, %v345
    %1322 = vmatpush.msra.mxu0 %v1270
    %1323 = vmatpush.msra.mxu0 %v1269
    %1324 = vmatpush.msra.mxu0 %v1268
    %1325 = vmatpush.msra.mxu0 %v1267
    %1326 = vmatpush.msra.mxu0 %v1266
    %1327 = vmatpush.msra.mxu0 %v1265
    %1328 = vmatpush.msra.mxu0 %v1264
    %1329 = vmatpush.msra.mxu0 %v1263
    %1330 = vmatpush.msra.mxu0 %v1262
    %1331 = vmatpush.msra.mxu0 %v1261
    %1332 = vmatpush.msra.mxu0 %v1260
    %1333 = vmatpush.msra.mxu0 %v1259
    %1334 = vmatpush.msra.mxu0 %v1258
    %1335 = vmatpush.msra.mxu0 %v1257
    %1336 = vmatpush.msra.mxu0 %v1256
    %1337 = vmatpush.msra.mxu0 %v1255
    %1338 = vmatmul.f32.gmra.mxu0 %v1247
    %v1339 = vpop.f32.mrf.mxu0
    %v1340 = vadd.f32 %v1320, %v1339
    %1341 = vmatmul.f32.gmra.mxu0 %v1251
    %v1342 = vpop.f32.mrf.mxu0
    %v1343 = vadd.f32 %v1321, %v1342
    %1344 = vdwg.mxu0
    %1345 = vmatpush.msra.mxu0 %v1286
    %1346 = vmatpush.msra.mxu0 %v1285
    %1347 = vmatpush.msra.mxu0 %v1284
    %1348 = vmatpush.msra.mxu0 %v1283
    %1349 = vmatpush.msra.mxu0 %v1282
    %1350 = vmatpush.msra.mxu0 %v1281
    %1351 = vmatpush.msra.mxu0 %v1280
    %1352 = vmatpush.msra.mxu0 %v1279
    %1353 = vmatpush.msra.mxu0 %v1278
    %1354 = vmatpush.msra.mxu0 %v1277
    %1355 = vmatpush.msra.mxu0 %v1276
    %1356 = vmatpush.msra.mxu0 %v1275
    %1357 = vmatpush.msra.mxu0 %v1274
    %1358 = vmatpush.msra.mxu0 %v1273
    %1359 = vmatpush.msra.mxu0 %v1272
    %1360 = vmatpush.msra.mxu0 %v1271
    %1361 = vmatmul.f32.gmra.mxu0 %v1248
    %v1362 = vpop.f32.mrf.mxu0
    %v1363 = vadd.f32 %v1340, %v1362
    %1364 = vmatmul.f32.gmra.mxu0 %v1252
    %v1365 = vpop.f32.mrf.mxu0
    %v1366 = vadd.f32 %v1343, %v1365
    %1367 = vdwg.mxu0
    %1368 = vmatpush.msra.mxu0 %v1302
    %1369 = vmatpush.msra.mxu0 %v1301
    %1370 = vmatpush.msra.mxu0 %v1300
    %1371 = vmatpush.msra.mxu0 %v1299
    %1372 = vmatpush.msra.mxu0 %v1298
    %1373 = vmatpush.msra.mxu0 %v1297
    %1374 = vmatpush.msra.mxu0 %v1296
    %1375 = vmatpush.msra.mxu0 %v1295
    %1376 = vmatpush.msra.mxu0 %v1294
    %1377 = vmatpush.msra.mxu0 %v1293
    %1378 = vmatpush.msra.mxu0 %v1292
    %1379 = vmatpush.msra.mxu0 %v1291
    %1380 = vmatpush.msra.mxu0 %v1290
    %1381 = vmatpush.msra.mxu0 %v1289
    %1382 = vmatpush.msra.mxu0 %v1288
    %1383 = vmatpush.msra.mxu0 %v1287
    %1384 = vmatmul.f32.gmra.mxu0 %v1249
    %v1385 = vpop.f32.mrf.mxu0
    %v1386 = vadd.f32 %v1363, %v1385
    %1387 = vmatmul.f32.gmra.mxu0 %v1253
    %v1388 = vpop.f32.mrf.mxu0
    %v1389 = vadd.f32 %v1366, %v1388
    %1390 = vdwg.mxu0
    %1391 = vmatpush.msra.mxu0 %v1318
    %1392 = vmatpush.msra.mxu0 %v1317
    %1393 = vmatpush.msra.mxu0 %v1316
    %1394 = vmatpush.msra.mxu0 %v1315
    %1395 = vmatpush.msra.mxu0 %v1314
    %1396 = vmatpush.msra.mxu0 %v1313
    %1397 = vmatpush.msra.mxu0 %v1312
    %1398 = vmatpush.msra.mxu0 %v1311
    %1399 = vmatpush.msra.mxu0 %v1310
    %1400 = vmatpush.msra.mxu0 %v1309
    %1401 = vmatpush.msra.mxu0 %v1308
    %1402 = vmatpush.msra.mxu0 %v1307
    %1403 = vmatpush.msra.mxu0 %v1306
    %1404 = vmatpush.msra.mxu0 %v1305
    %1405 = vmatpush.msra.mxu0 %v1304
    %1406 = vmatpush.msra.mxu0 %v1303
    %1407 = vmatmul.f32.gmra.mxu0 %v1250
    %v1408 = vpop.f32.mrf.mxu0
    %v1409 = vadd.f32 %v1386, %v1408
    %1410 = vmatmul.f32.gmra.mxu0 %v1254
    %v1411 = vpop.f32.mrf.mxu0
    %v1412 = vadd.f32 %v1389, %v1411
    %1413 = vdwg.mxu0
    %v1414 = vsub.f32 0.0, %v221
    %v1415 = vsub.f32 0.0, %v224
    %v1416 = vmul.f32 %v1414, 1.442695
    %v1417 = vpow.pop %v1416
    %v1418 = vmul.f32 %v1415, 1.442695
    %v1419 = vpow.pop %v1418
    %v1420 = vadd.f32 %v1417, 1.0
    %v1421 = vadd.f32 %v1419, 1.0
    %v1422 = vrcp.pop %v1420
    %v1423 = vmul.f32 %v1420, %v1422
    %v1424 = vsub.f32 1.0, %v1423
    %v1425 = vmul.f32 %v1422, %v1424
    %v1426 = vadd.f32 %v1422, %v1425
    %vm1427 = vweird.f32 %v1420
    %vm1428 = vweird.f32 %v1422
    %vm1429 = vmor %vm1427, %vm1428
    %v1430 = vsel %vm1429, %v1422, %v1426
    %v1431 = vand.u32 2147483647, %v1420
    %vm1432 = vcmp.eq.f32.partialorder %v1431, 8.507059e+37
    %v1433 = vand.u32 %v1420, 2147483648
    %v1434 = vor.u32 1.1754944e-38, %v1433
    %v1435 = vsel %vm1432, %v1434, %v1430
    %v1436 = vmul.f32 1.0, %v1435
    %v1437 = vrcp.pop %v1421
    %v1438 = vmul.f32 %v1421, %v1437
    %v1439 = vsub.f32 1.0, %v1438
    %v1440 = vmul.f32 %v1437, %v1439
    %v1441 = vadd.f32 %v1437, %v1440
    %vm1442 = vweird.f32 %v1421
    %vm1443 = vweird.f32 %v1437
    %vm1444 = vmor %vm1442, %vm1443
    %v1445 = vsel %vm1444, %v1437, %v1441
    %v1446 = vand.u32 2147483647, %v1421
    %vm1447 = vcmp.eq.f32.partialorder %v1446, 8.507059e+37
    %v1448 = vand.u32 %v1421, 2147483648
    %v1449 = vor.u32 1.1754944e-38, %v1448
    %v1450 = vsel %vm1447, %v1449, %v1445
    %v1451 = vmul.f32 1.0, %v1450
    %v1452 = vmul.f32 %v221, %v1436
    %v1453 = vmul.f32 %v224, %v1451
    %1456 = vrot.lane.b32.xlu0 %v1452, 96
    %v1457 = vpop.permute.xlu0 %1456
    %1458 = vrot.lane.b32.xlu0 %v1453, 96
    %v1459 = vpop.permute.xlu0 %1458
    %v1462 = vmul.f32 %v1409, %v1457
    %v1463 = vmul.f32 %v1412, %v1459
    %v1464 = vld [vmem:[%s10] sm:$0xff]
    %v1465 = vld [vmem:[%s10 + $0x8] sm:$0xff]
    %v1466 = vld [vmem:[%s10 + $0x10] sm:$0xff]
    %v1467 = vld [vmem:[%s10 + $0x18] sm:$0xff]
    %v1469 = vsel %vm350, %v1462, 0
    %v1472 = vsel %vm350, %v1463, 0
    %1474 = vmatpush.msra.mxu0 0.0
    %1475 = vmatpush.msra.mxu0 0.0
    %1476 = vmatpush.msra.mxu0 0.0
    %1477 = vmatpush.msra.mxu0 0.0
    %1478 = vmatpush.msra.mxu0 0.0
    %1479 = vmatpush.msra.mxu0 0.0
    %1480 = vmatpush.msra.mxu0 0.0
    %1481 = vmatpush.msra.mxu0 0.0
    %1482 = vmatpush.msra.mxu0 0.0
    %1483 = vmatpush.msra.mxu0 0.0
    %1484 = vmatpush.msra.mxu0 0.0
    %1485 = vmatpush.msra.mxu0 0.0
    %1486 = vmatpush.msra.mxu0 %v1467
    %1487 = vmatpush.msra.mxu0 %v1466
    %1488 = vmatpush.msra.mxu0 %v1465
    %1489 = vmatpush.msra.mxu0 %v1464
    %1490 = vmatmul.f32.gmra.mxu0 %v1469
    %v1491 = vpop.f32.mrf.mxu0
    %v1492 = vadd.f32 %v156, %v1491
    %1493 = vmatmul.f32.gmra.mxu0 %v1472
    %v1494 = vpop.f32.mrf.mxu0
    %v1495 = vadd.f32 %v157, %v1494
    %1496 = vdwg.mxu0
    %v1497 = vmul.f32 %v1492, %v1492
    %v1498 = vmul.f32 %v1495, %v1495
    %v1499 = vsel %vm100, %v1497, 0.0
    %1500 = vadd.xlane.f32.xlu0 %v1499
    %v1501 = vpop.xlane.xlu0 %1500
    %v1502 = vsel %vm100, %v1498, 0.0
    %1503 = vadd.xlane.f32.xlu0 %v1502
    %v1504 = vpop.xlane.xlu0 %1503
    %v1505 = vmul.f32 %v1501, %v113
    %v1506 = vmul.f32 %v1504, %v113
    %v1507 = vadd.f32 %v1505, 1e-05
    %v1508 = vadd.f32 %v1506, 1e-05
    %v1509 = vrsqrt.pop %v1507
    %v1510 = vmul.f32 %v1509, %v1507
    %v1511 = vmul.f32 %v1510, %v1509
    %v1512 = vmul.f32 0.5, %v1511
    %v1513 = vsub.f32 1.5, %v1512
    %v1514 = vmul.f32 %v1509, %v1513
    %vm1515 = vweird.f32 %v1507
    %vm1516 = vweird.f32 %v1509
    %vm1517 = vmor %vm1515, %vm1516
    %v1518 = vsel %vm1517, %v1509, %v1514
    %v1519 = vrsqrt.pop %v1508
    %v1520 = vmul.f32 %v1519, %v1508
    %v1521 = vmul.f32 %v1520, %v1519
    %v1522 = vmul.f32 0.5, %v1521
    %v1523 = vsub.f32 1.5, %v1522
    %v1524 = vmul.f32 %v1519, %v1523
    %vm1525 = vweird.f32 %v1508
    %vm1526 = vweird.f32 %v1519
    %vm1527 = vmor %vm1525, %vm1526
    %v1528 = vsel %vm1527, %v1519, %v1524
    %v1529 = vmul.f32 %v1492, %v1518
    %v1530 = vmul.f32 %v1495, %v1528
    %v1531 = vperm.slane %v60, 4
    %v1532 = vmul.f32 %v1529, %v1531
    %v1533 = vmul.f32 %v1530, %v1531
    %1534 = vrot.lane.b32.xlu0 %v58, 14
    %v1535 = vpop.permute.xlu0 %1534
    %1536 = vrot.lane.b32.xlu0 %v59, 14
    %v1537 = vpop.permute.xlu0 %1536
    %v1540 = vsel %vm100, %v1532, %v1535
    %v1541 = vsel %vm100, %v1533, %v1537
    %vm1542 = vcmask 138240
    %v1543 = vsel %vm1542, %v1540, 1.0
    %v1544 = vsel %vm1542, %v1541, 1.0
    %v1545 = vld [vmem:[%s11] sm:$0x3]
    %vm1546 = vcmask 146432
    %v1548 = vsel %vm1546, %v1545, 0
    %v1551 = vsel %vm1546, %v1543, 0
    %v1554 = vsel %vm1546, %v1544, 0
    %1556 = vmatpush.xpose.msra.mxu0 0.0
    %1557 = vmatpush.xpose.msra.mxu0 0.0
    %1558 = vmatpush.xpose.msra.mxu0 0.0
    %1559 = vmatpush.xpose.msra.mxu0 0.0
    %1560 = vmatpush.xpose.msra.mxu0 0.0
    %1561 = vmatpush.xpose.msra.mxu0 0.0
    %1562 = vmatpush.xpose.msra.mxu0 0.0
    %1563 = vmatpush.xpose.msra.mxu0 0.0
    %1564 = vmatpush.xpose.msra.mxu0 0.0
    %1565 = vmatpush.xpose.msra.mxu0 0.0
    %1566 = vmatpush.xpose.msra.mxu0 0.0
    %1567 = vmatpush.xpose.msra.mxu0 0.0
    %1568 = vmatpush.xpose.msra.mxu0 0.0
    %1569 = vmatpush.xpose.msra.mxu0 0.0
    %1570 = vmatpush.xpose.msra.mxu0 %v1554
    %1571 = vmatpush.xpose.msra.mxu0 %v1551
    %1572 = vmatmul.f32.gmra.mxu0 %v1548
    %v1573 = vpop.f32.mrf.mxu0
    %v1574 = vadd.f32 0.0, %v1573
    %1575 = vdwg.mxu0
    %vm1576 = vcmask 123904
    %1577 = vst.msk [vmem:[#allocation5] sm:$0x3] %vm1576, %v1574
    // Predicated region
    $region54: #{tpu_custom_call.1} parent=1 // pred_check
      _
    $region55: #{tpu_custom_call.1} parent=1 // pred_check_branch
      %1579 = sbr.rel (0) target = $region57
    $region56: #{tpu_custom_call.1} parent=1 // pred_region
      %1581 = vsyncadd [#allocation4], 0
      %s1583 = sshll.u32 [#allocation5], 4
      %s1584 = int_to_ptr.vmem [resolvable:$true] %s1583
      %s1585 = sshll.u32 %s12, 4
      %s1586 = int_to_ptr.hbm [resolvable:$true] %s1585
      %1588 = dma.vmem_to_hbm [thread:$0]  %s1584, 32, %s1586, [#allocation4]
    $region57: #{tpu_custom_call.1} parent=1 // pred_fallthru
      _
    // Predicated region
    $region58: #{tpu_custom_call.1} parent=1 // pred_check
      _
    $region59: #{tpu_custom_call.1} parent=1 // pred_check_branch
      %1590 = sbr.rel (0) target = $region61
    $region60: #{tpu_custom_call.1} parent=1 // pred_region
      %1592 = dma.done [#allocation4], 32
    $region61: #{tpu_custom_call.1} parent=1 // pred_fallthru
      _
    %1593 = vsyncpa [#allocation3], 1
    %1594 = vsyncpa [#allocation4], 1

</llo_original>
